<compile_context>
chip_gen: v7x
topology: tpu7x:2x2x1
jax: 0.10.0
libtpu: 0.0.40
codegen_flags: <defaults>
</compile_context>

<pallas_src>
import jax
import jax.numpy as jnp
from jax import lax
from jax.experimental import pallas as pl
from jax.experimental.pallas import tpu as pltpu


# ----------------------------- Pallas kernel -------------------------------

def rnn_listener_kernel(xproj_ref, lens_ref, whh_ref, bhh_ref,
                        wout_ref, bout_ref, o_ref):
    """Fused-gate GRU recurrence + final linear + unit-norm, entirely in VMEM.

    xproj_ref : (T, B, 3H) f32   precomputed x_t @ Wih_fused + bih_fused (gates r|z|n)
    lens_ref  : (B, 1)     i32   sequence lengths (pack_padded_sequence emulation)
    whh_ref   : (H, 3H)    f32   fused hidden->hidden weights, gates r|z|n
    bhh_ref   : (1, 3H)    f32
    wout_ref  : (H, H)     f32   hid_to_hid weight (out = h @ W)
    bout_ref  : (1, H)     f32
    o_ref     : (B, H)     f32   output
    """
    T, B, G = xproj_ref.shape
    H = G // 3

    # Hoist constant loads out of the recurrence (one vld each, not per step).
    whh = whh_ref[...]      # (H, 3H)
    bhh = bhh_ref[...]      # (1, 3H)
    lens = lens_ref[...]    # (B, 1) int32

    def step(t, h):
        xp = xproj_ref[t]                                                   # (B, 3H)
        hp = jnp.dot(h, whh, preferred_element_type=jnp.float32) + bhh      # (B, 3H)
        r = jax.nn.sigmoid(xp[:, 0:H] + hp[:, 0:H])
        z = jax.nn.sigmoid(xp[:, H:2 * H] + hp[:, H:2 * H])
        # n-gate: bhh_n stays inside r*(...) — exact PyTorch GRU formulation.
        n = jnp.tanh(xp[:, 2 * H:] + r * hp[:, 2 * H:])
        h_new = n + z * (h - n)                     # == (1 - z) * n + z * h
        m = (lens > t).astype(jnp.float32)          # (B, 1) validity mask
        return h + m * (h_new - h)                  # freeze h once t >= len[b]

    # h lives in the loop carry (vregs), fully unrolled across T.
    h = lax.fori_loop(0, T, step, jnp.zeros((B, H), jnp.float32), unroll=True)

    out = jnp.dot(h, wout_ref[...], preferred_element_type=jnp.float32) + bout_ref[...]
    # unit_norm = True
    norm = jnp.sqrt(jnp.sum(out * out, axis=1, keepdims=True)) + 1e-9
    o_ref[...] = out / norm


# ------------------------------- wrapper ------------------------------------

def rnn_listener_forward(spk_msg, spk_msg_lens, params):
    """Forward pass of RnnListener (num_layers=1, num_directions=1, unit_norm=True)."""
    emb_table, wih, whh, bih, bhh, wout, bout = params
    B, T = spk_msg.shape
    H = whh.shape[2]

    # Glue (wrapper XLA): embedding gather (padding row 0 is zero) + dropout
    # (identity, eval mode), then the hoisted input-to-hidden projection.
    x_emb = emb_table[spk_msg].astype(jnp.float32)               # (B, T, D_emb)
    x_emb = jnp.transpose(x_emb, (1, 0, 2))                      # (T, B, D_emb)

    # Fuse the three gates (order r|z|n); fold bih into the precomputed term
    # (exact: bih only enters additively for all three gates).
    wih_f = jnp.concatenate([wih[0], wih[1], wih[2]], axis=1)    # (D_emb, 3H)
    bih_f = jnp.concatenate([bih[0], bih[1], bih[2]], axis=1)    # (1, 3H)
    whh_f = jnp.concatenate([whh[0], whh[1], whh[2]], axis=1)    # (H, 3H)
    bhh_f = jnp.concatenate([bhh[0], bhh[1], bhh[2]], axis=1)    # (1, 3H)

    # All 3*T input-to-hidden matmuls collapsed into one call, off the critical path.
    x_proj = jnp.einsum('tbd,dg->tbg', x_emb, wih_f) + bih_f[None]   # (T, B, 3H)

    lens = spk_msg_lens.astype(jnp.int32).reshape(B, 1)

    vmem = pl.BlockSpec(memory_space=pltpu.MemorySpace.VMEM)
    out = pl.pallas_call(
        rnn_listener_kernel,
        out_shape=jax.ShapeDtypeStruct((B, H), jnp.float32),
        in_specs=[vmem] * 6,
        out_specs=vmem,
    )(x_proj, lens, whh_f, bhh_f, wout, bout)
    return out


# -------------------------- deterministic params ----------------------------

def init_params(key, vocab_size, d_emb, d_hid):
    k_emb, k_wih, k_whh, k_bih, k_bhh, k_wo, k_bo = jax.random.split(key, 7)

    # nn.Embedding: N(0,1), padding_idx=0 row zeroed.
    emb = jax.random.normal(k_emb, (vocab_size, d_emb), jnp.float32)
    emb = emb.at[0].set(0.0)

    # nn.GRU params: U(-1/sqrt(H), 1/sqrt(H)); gate order [r, z, n].
    s = 1.0 / jnp.sqrt(d_hid)
    wih = jax.random.uniform(k_wih, (3, d_emb, d_hid), jnp.float32, -s, s)
    whh = jax.random.uniform(k_whh, (3, d_hid, d_hid), jnp.float32, -s, s)
    bih = jax.random.uniform(k_bih, (3, 1, d_hid), jnp.float32, -s, s)
    bhh = jax.random.uniform(k_bhh, (3, 1, d_hid), jnp.float32, -s, s)

    # nn.Linear(num_directions*D_hid -> D_hid): U(-1/sqrt(fan_in), 1/sqrt(fan_in)).
    so = 1.0 / jnp.sqrt(d_hid)
    wout = jax.random.uniform(k_wo, (d_hid, d_hid), jnp.float32, -so, so)   # (in, out)
    bout = jax.random.uniform(k_bo, (1, d_hid), jnp.float32, -so, so)

    return (emb, wih, whh, bih, bhh, wout, bout)


# ---------------------------- pure-JAX reference ----------------------------

def reference_forward(spk_msg, spk_msg_lens, params):
    emb_table, wih, whh, bih, bhh, wout, bout = params
    B, T = spk_msg.shape
    H = whh.shape[2]
    x = emb_table[spk_msg].astype(jnp.float32)
    h = jnp.zeros((B, H), jnp.float32)
    for t in range(T):
        x_t = x[:, t, :]
        r = jax.nn.sigmoid(x_t @ wih[0] + bih[0] + h @ whh[0] + bhh[0])
        z = jax.nn.sigmoid(x_t @ wih[1] + bih[1] + h @ whh[1] + bhh[1])
        n = jnp.tanh(x_t @ wih[2] + bih[2] + r * (h @ whh[2] + bhh[2]))
        h_new = (1.0 - z) * n + z * h
        m = (t < spk_msg_lens).astype(jnp.float32)[:, None]
        h = m * h_new + (1.0 - m) * h
    out = h @ wout + bout
    norm = jnp.sqrt(jnp.sum(out * out, axis=1, keepdims=True)) + 1e-9
    return out / norm


# --------------------------------- main --------------------------------------

if __name__ == "__main__":
    # Small config implied by the module: batch=4, seq=8, D_emb=32, D_hid=32,
    # vocab=20, num_layers=1, num_directions=1, unit_norm=True, dropout=eval.
    B, T, D_EMB, D_HID, VOCAB = 4, 8, 32, 32, 20

    key = jax.random.PRNGKey(0)
    k_par, k_msg = jax.random.split(key)

    params = init_params(k_par, VOCAB, D_EMB, D_HID)

    # Token ids in [1, vocab) (0 is padding); lengths sorted descending like
    # pack_padded_sequence expects. Positions >= length are set to padding 0.
    spk_msg = jax.random.randint(k_msg, (B, T), 1, VOCAB, dtype=jnp.int32)
    spk_msg_lens = jnp.array([8, 6, 5, 3], dtype=jnp.int32)
    pad_mask = jnp.arange(T)[None, :] < spk_msg_lens[:, None]
    spk_msg = jnp.where(pad_mask, spk_msg, 0)

    out = rnn_listener_forward(spk_msg, spk_msg_lens, params)
    out = jax.block_until_ready(out)

    ref = reference_forward(spk_msg, spk_msg_lens, params)
    assert out.shape == (B, D_HID)
    assert jnp.allclose(out, ref, atol=1e-5, rtol=1e-5), "Pallas output != reference"

    # TODO(synk): dropout implemented as identity (inference mode); training-mode
    # stochastic dropout would use pltpu.prng_seed + pltpu.prng_random_bits.
    print("KERNEL_OK")
</pallas_src>

<mosaic_0001>
module attributes {stable_mosaic.version = 11 : i64} {
  func.func @rnn_listener_kernel(%arg0: memref<8x4x96xf32, #tpu.memory_space<vmem>>, %arg1: memref<4x1xi32, #tpu.memory_space<vmem>>, %arg2: memref<32x96xf32, #tpu.memory_space<vmem>>, %arg3: memref<1x96xf32, #tpu.memory_space<vmem>>, %arg4: memref<32x32xf32, #tpu.memory_space<vmem>>, %arg5: memref<1x32xf32, #tpu.memory_space<vmem>>, %arg6: memref<4x32xf32, #tpu.memory_space<vmem>>) attributes {dimension_semantics = [], scalar_prefetch = 0 : i64, scratch_operands = 0 : i64, tpu.core_type = #tpu.core_type<tc>} {
    %c0 = arith.constant 0 : index
    %c0_0 = arith.constant 0 : index
    %0 = vector.load %arg2[%c0, %c0_0] : memref<32x96xf32, #tpu.memory_space<vmem>>, vector<32x96xf32>
    %c0_1 = arith.constant 0 : index
    %c0_2 = arith.constant 0 : index
    %1 = vector.load %arg3[%c0_1, %c0_2] : memref<1x96xf32, #tpu.memory_space<vmem>>, vector<1x96xf32>
    %c0_3 = arith.constant 0 : index
    %c0_4 = arith.constant 0 : index
    %2 = vector.load %arg1[%c0_3, %c0_4] : memref<4x1xi32, #tpu.memory_space<vmem>>, vector<4x1xi32>
    %cst = arith.constant 0.000000e+00 : f32
    %3 = vector.broadcast %cst : f32 to vector<4x32xf32>
    %c0_i32 = arith.constant 0 : i32
    %4 = arith.index_cast %c0_i32 : i32 to index
    %c0_5 = arith.constant 0 : index
    %c0_6 = arith.constant 0 : index
    %5 = vector.load %arg0[%4, %c0_5, %c0_6] : memref<8x4x96xf32, #tpu.memory_space<vmem>>, vector<1x4x96xf32>
    %6 = vector.shape_cast %5 : vector<1x4x96xf32> to vector<4x96xf32>
    %cst_7 = arith.constant dense<0.000000e+00> : vector<4x96xf32>
    %7 = tpu.matmul %3, %0, %cst_7 {dimension_numbers = #tpu.dot_dimension_numbers<[1], [0], [0], [1], [0, 0, 1, 1], [], []>} : vector<4x32xf32>, vector<32x96xf32>, vector<4x96xf32> -> vector<4x96xf32>
    %8 = vector.broadcast %1 : vector<1x96xf32> to vector<4x96xf32>
    %9 = arith.addf %7, %8 : vector<4x96xf32>
    %10 = vector.extract_strided_slice %6 {offsets = [0, 0], sizes = [4, 32], strides = [1, 1]} : vector<4x96xf32> to vector<4x32xf32>
    %11 = vector.extract_strided_slice %9 {offsets = [0, 0], sizes = [4, 32], strides = [1, 1]} : vector<4x96xf32> to vector<4x32xf32>
    %12 = arith.addf %10, %11 : vector<4x32xf32>
    %13 = arith.negf %12 : vector<4x32xf32>
    %14 = math.exp %13 : vector<4x32xf32>
    %cst_8 = arith.constant 1.000000e+00 : f32
    %15 = vector.broadcast %cst_8 : f32 to vector<4x32xf32>
    %16 = arith.addf %15, %14 : vector<4x32xf32>
    %17 = arith.divf %15, %16 : vector<4x32xf32>
    %18 = vector.extract_strided_slice %6 {offsets = [0, 32], sizes = [4, 32], strides = [1, 1]} : vector<4x96xf32> to vector<4x32xf32>
    %19 = vector.extract_strided_slice %9 {offsets = [0, 32], sizes = [4, 32], strides = [1, 1]} : vector<4x96xf32> to vector<4x32xf32>
    %20 = arith.addf %18, %19 : vector<4x32xf32>
    %21 = arith.negf %20 : vector<4x32xf32>
    %22 = math.exp %21 : vector<4x32xf32>
    %cst_9 = arith.constant 1.000000e+00 : f32
    %23 = vector.broadcast %cst_9 : f32 to vector<4x32xf32>
    %24 = arith.addf %23, %22 : vector<4x32xf32>
    %25 = arith.divf %23, %24 : vector<4x32xf32>
    %26 = vector.extract_strided_slice %6 {offsets = [0, 64], sizes = [4, 32], strides = [1, 1]} : vector<4x96xf32> to vector<4x32xf32>
    %27 = vector.extract_strided_slice %9 {offsets = [0, 64], sizes = [4, 32], strides = [1, 1]} : vector<4x96xf32> to vector<4x32xf32>
    %28 = arith.mulf %17, %27 : vector<4x32xf32>
    %29 = arith.addf %26, %28 : vector<4x32xf32>
    %30 = math.tanh %29 : vector<4x32xf32>
    %31 = arith.subf %3, %30 : vector<4x32xf32>
    %32 = arith.mulf %25, %31 : vector<4x32xf32>
    %33 = arith.addf %30, %32 : vector<4x32xf32>
    %34 = vector.broadcast %c0_i32 : i32 to vector<4x1xi32>
    %35 = arith.cmpi sgt, %2, %34 : vector<4x1xi32>
    %36 = arith.extui %35 : vector<4x1xi1> to vector<4x1xi32>
    %37 = arith.sitofp %36 : vector<4x1xi32> to vector<4x1xf32>
    %38 = arith.subf %33, %3 : vector<4x32xf32>
    %39 = vector.broadcast %37 : vector<4x1xf32> to vector<4x32xf32>
    %40 = arith.mulf %39, %38 : vector<4x32xf32>
    %41 = arith.addf %3, %40 : vector<4x32xf32>
    %c1_i32 = arith.constant 1 : i32
    %42 = arith.index_cast %c1_i32 : i32 to index
    %c0_10 = arith.constant 0 : index
    %c0_11 = arith.constant 0 : index
    %43 = vector.load %arg0[%42, %c0_10, %c0_11] : memref<8x4x96xf32, #tpu.memory_space<vmem>>, vector<1x4x96xf32>
    %44 = vector.shape_cast %43 : vector<1x4x96xf32> to vector<4x96xf32>
    %cst_12 = arith.constant dense<0.000000e+00> : vector<4x96xf32>
    %45 = tpu.matmul %41, %0, %cst_12 {dimension_numbers = #tpu.dot_dimension_numbers<[1], [0], [0], [1], [0, 0, 1, 1], [], []>} : vector<4x32xf32>, vector<32x96xf32>, vector<4x96xf32> -> vector<4x96xf32>
    %46 = vector.broadcast %1 : vector<1x96xf32> to vector<4x96xf32>
    %47 = arith.addf %45, %46 : vector<4x96xf32>
    %48 = vector.extract_strided_slice %44 {offsets = [0, 0], sizes = [4, 32], strides = [1, 1]} : vector<4x96xf32> to vector<4x32xf32>
    %49 = vector.extract_strided_slice %47 {offsets = [0, 0], sizes = [4, 32], strides = [1, 1]} : vector<4x96xf32> to vector<4x32xf32>
    %50 = arith.addf %48, %49 : vector<4x32xf32>
    %51 = arith.negf %50 : vector<4x32xf32>
    %52 = math.exp %51 : vector<4x32xf32>
    %cst_13 = arith.constant 1.000000e+00 : f32
    %53 = vector.broadcast %cst_13 : f32 to vector<4x32xf32>
    %54 = arith.addf %53, %52 : vector<4x32xf32>
    %55 = arith.divf %53, %54 : vector<4x32xf32>
    %56 = vector.extract_strided_slice %44 {offsets = [0, 32], sizes = [4, 32], strides = [1, 1]} : vector<4x96xf32> to vector<4x32xf32>
    %57 = vector.extract_strided_slice %47 {offsets = [0, 32], sizes = [4, 32], strides = [1, 1]} : vector<4x96xf32> to vector<4x32xf32>
    %58 = arith.addf %56, %57 : vector<4x32xf32>
    %59 = arith.negf %58 : vector<4x32xf32>
    %60 = math.exp %59 : vector<4x32xf32>
    %cst_14 = arith.constant 1.000000e+00 : f32
    %61 = vector.broadcast %cst_14 : f32 to vector<4x32xf32>
    %62 = arith.addf %61, %60 : vector<4x32xf32>
    %63 = arith.divf %61, %62 : vector<4x32xf32>
    %64 = vector.extract_strided_slice %44 {offsets = [0, 64], sizes = [4, 32], strides = [1, 1]} : vector<4x96xf32> to vector<4x32xf32>
    %65 = vector.extract_strided_slice %47 {offsets = [0, 64], sizes = [4, 32], strides = [1, 1]} : vector<4x96xf32> to vector<4x32xf32>
    %66 = arith.mulf %55, %65 : vector<4x32xf32>
    %67 = arith.addf %64, %66 : vector<4x32xf32>
    %68 = math.tanh %67 : vector<4x32xf32>
    %69 = arith.subf %41, %68 : vector<4x32xf32>
    %70 = arith.mulf %63, %69 : vector<4x32xf32>
    %71 = arith.addf %68, %70 : vector<4x32xf32>
    %72 = vector.broadcast %c1_i32 : i32 to vector<4x1xi32>
    %73 = arith.cmpi sgt, %2, %72 : vector<4x1xi32>
    %74 = arith.extui %73 : vector<4x1xi1> to vector<4x1xi32>
    %75 = arith.sitofp %74 : vector<4x1xi32> to vector<4x1xf32>
    %76 = arith.subf %71, %41 : vector<4x32xf32>
    %77 = vector.broadcast %75 : vector<4x1xf32> to vector<4x32xf32>
    %78 = arith.mulf %77, %76 : vector<4x32xf32>
    %79 = arith.addf %41, %78 : vector<4x32xf32>
    %c2_i32 = arith.constant 2 : i32
    %80 = arith.index_cast %c2_i32 : i32 to index
    %c0_15 = arith.constant 0 : index
    %c0_16 = arith.constant 0 : index
    %81 = vector.load %arg0[%80, %c0_15, %c0_16] : memref<8x4x96xf32, #tpu.memory_space<vmem>>, vector<1x4x96xf32>
    %82 = vector.shape_cast %81 : vector<1x4x96xf32> to vector<4x96xf32>
    %cst_17 = arith.constant dense<0.000000e+00> : vector<4x96xf32>
    %83 = tpu.matmul %79, %0, %cst_17 {dimension_numbers = #tpu.dot_dimension_numbers<[1], [0], [0], [1], [0, 0, 1, 1], [], []>} : vector<4x32xf32>, vector<32x96xf32>, vector<4x96xf32> -> vector<4x96xf32>
    %84 = vector.broadcast %1 : vector<1x96xf32> to vector<4x96xf32>
    %85 = arith.addf %83, %84 : vector<4x96xf32>
    %86 = vector.extract_strided_slice %82 {offsets = [0, 0], sizes = [4, 32], strides = [1, 1]} : vector<4x96xf32> to vector<4x32xf32>
    %87 = vector.extract_strided_slice %85 {offsets = [0, 0], sizes = [4, 32], strides = [1, 1]} : vector<4x96xf32> to vector<4x32xf32>
    %88 = arith.addf %86, %87 : vector<4x32xf32>
    %89 = arith.negf %88 : vector<4x32xf32>
    %90 = math.exp %89 : vector<4x32xf32>
    %cst_18 = arith.constant 1.000000e+00 : f32
    %91 = vector.broadcast %cst_18 : f32 to vector<4x32xf32>
    %92 = arith.addf %91, %90 : vector<4x32xf32>
    %93 = arith.divf %91, %92 : vector<4x32xf32>
    %94 = vector.extract_strided_slice %82 {offsets = [0, 32], sizes = [4, 32], strides = [1, 1]} : vector<4x96xf32> to vector<4x32xf32>
    %95 = vector.extract_strided_slice %85 {offsets = [0, 32], sizes = [4, 32], strides = [1, 1]} : vector<4x96xf32> to vector<4x32xf32>
    %96 = arith.addf %94, %95 : vector<4x32xf32>
    %97 = arith.negf %96 : vector<4x32xf32>
    %98 = math.exp %97 : vector<4x32xf32>
    %cst_19 = arith.constant 1.000000e+00 : f32
    %99 = vector.broadcast %cst_19 : f32 to vector<4x32xf32>
    %100 = arith.addf %99, %98 : vector<4x32xf32>
    %101 = arith.divf %99, %100 : vector<4x32xf32>
    %102 = vector.extract_strided_slice %82 {offsets = [0, 64], sizes = [4, 32], strides = [1, 1]} : vector<4x96xf32> to vector<4x32xf32>
    %103 = vector.extract_strided_slice %85 {offsets = [0, 64], sizes = [4, 32], strides = [1, 1]} : vector<4x96xf32> to vector<4x32xf32>
    %104 = arith.mulf %93, %103 : vector<4x32xf32>
    %105 = arith.addf %102, %104 : vector<4x32xf32>
    %106 = math.tanh %105 : vector<4x32xf32>
    %107 = arith.subf %79, %106 : vector<4x32xf32>
    %108 = arith.mulf %101, %107 : vector<4x32xf32>
    %109 = arith.addf %106, %108 : vector<4x32xf32>
    %110 = vector.broadcast %c2_i32 : i32 to vector<4x1xi32>
    %111 = arith.cmpi sgt, %2, %110 : vector<4x1xi32>
    %112 = arith.extui %111 : vector<4x1xi1> to vector<4x1xi32>
    %113 = arith.sitofp %112 : vector<4x1xi32> to vector<4x1xf32>
    %114 = arith.subf %109, %79 : vector<4x32xf32>
    %115 = vector.broadcast %113 : vector<4x1xf32> to vector<4x32xf32>
    %116 = arith.mulf %115, %114 : vector<4x32xf32>
    %117 = arith.addf %79, %116 : vector<4x32xf32>
    %c3_i32 = arith.constant 3 : i32
    %118 = arith.index_cast %c3_i32 : i32 to index
    %c0_20 = arith.constant 0 : index
    %c0_21 = arith.constant 0 : index
    %119 = vector.load %arg0[%118, %c0_20, %c0_21] : memref<8x4x96xf32, #tpu.memory_space<vmem>>, vector<1x4x96xf32>
    %120 = vector.shape_cast %119 : vector<1x4x96xf32> to vector<4x96xf32>
    %cst_22 = arith.constant dense<0.000000e+00> : vector<4x96xf32>
    %121 = tpu.matmul %117, %0, %cst_22 {dimension_numbers = #tpu.dot_dimension_numbers<[1], [0], [0], [1], [0, 0, 1, 1], [], []>} : vector<4x32xf32>, vector<32x96xf32>, vector<4x96xf32> -> vector<4x96xf32>
    %122 = vector.broadcast %1 : vector<1x96xf32> to vector<4x96xf32>
    %123 = arith.addf %121, %122 : vector<4x96xf32>
    %124 = vector.extract_strided_slice %120 {offsets = [0, 0], sizes = [4, 32], strides = [1, 1]} : vector<4x96xf32> to vector<4x32xf32>
    %125 = vector.extract_strided_slice %123 {offsets = [0, 0], sizes = [4, 32], strides = [1, 1]} : vector<4x96xf32> to vector<4x32xf32>
    %126 = arith.addf %124, %125 : vector<4x32xf32>
    %127 = arith.negf %126 : vector<4x32xf32>
    %128 = math.exp %127 : vector<4x32xf32>
    %cst_23 = arith.constant 1.000000e+00 : f32
    %129 = vector.broadcast %cst_23 : f32 to vector<4x32xf32>
    %130 = arith.addf %129, %128 : vector<4x32xf32>
    %131 = arith.divf %129, %130 : vector<4x32xf32>
    %132 = vector.extract_strided_slice %120 {offsets = [0, 32], sizes = [4, 32], strides = [1, 1]} : vector<4x96xf32> to vector<4x32xf32>
    %133 = vector.extract_strided_slice %123 {offsets = [0, 32], sizes = [4, 32], strides = [1, 1]} : vector<4x96xf32> to vector<4x32xf32>
    %134 = arith.addf %132, %133 : vector<4x32xf32>
    %135 = arith.negf %134 : vector<4x32xf32>
    %136 = math.exp %135 : vector<4x32xf32>
    %cst_24 = arith.constant 1.000000e+00 : f32
    %137 = vector.broadcast %cst_24 : f32 to vector<4x32xf32>
    %138 = arith.addf %137, %136 : vector<4x32xf32>
    %139 = arith.divf %137, %138 : vector<4x32xf32>
    %140 = vector.extract_strided_slice %120 {offsets = [0, 64], sizes = [4, 32], strides = [1, 1]} : vector<4x96xf32> to vector<4x32xf32>
    %141 = vector.extract_strided_slice %123 {offsets = [0, 64], sizes = [4, 32], strides = [1, 1]} : vector<4x96xf32> to vector<4x32xf32>
    %142 = arith.mulf %131, %141 : vector<4x32xf32>
    %143 = arith.addf %140, %142 : vector<4x32xf32>
    %144 = math.tanh %143 : vector<4x32xf32>
    %145 = arith.subf %117, %144 : vector<4x32xf32>
    %146 = arith.mulf %139, %145 : vector<4x32xf32>
    %147 = arith.addf %144, %146 : vector<4x32xf32>
    %148 = vector.broadcast %c3_i32 : i32 to vector<4x1xi32>
    %149 = arith.cmpi sgt, %2, %148 : vector<4x1xi32>
    %150 = arith.extui %149 : vector<4x1xi1> to vector<4x1xi32>
    %151 = arith.sitofp %150 : vector<4x1xi32> to vector<4x1xf32>
    %152 = arith.subf %147, %117 : vector<4x32xf32>
    %153 = vector.broadcast %151 : vector<4x1xf32> to vector<4x32xf32>
    %154 = arith.mulf %153, %152 : vector<4x32xf32>
    %155 = arith.addf %117, %154 : vector<4x32xf32>
    %c4_i32 = arith.constant 4 : i32
    %156 = arith.index_cast %c4_i32 : i32 to index
    %c0_25 = arith.constant 0 : index
    %c0_26 = arith.constant 0 : index
    %157 = vector.load %arg0[%156, %c0_25, %c0_26] : memref<8x4x96xf32, #tpu.memory_space<vmem>>, vector<1x4x96xf32>
    %158 = vector.shape_cast %157 : vector<1x4x96xf32> to vector<4x96xf32>
    %cst_27 = arith.constant dense<0.000000e+00> : vector<4x96xf32>
    %159 = tpu.matmul %155, %0, %cst_27 {dimension_numbers = #tpu.dot_dimension_numbers<[1], [0], [0], [1], [0, 0, 1, 1], [], []>} : vector<4x32xf32>, vector<32x96xf32>, vector<4x96xf32> -> vector<4x96xf32>
    %160 = vector.broadcast %1 : vector<1x96xf32> to vector<4x96xf32>
    %161 = arith.addf %159, %160 : vector<4x96xf32>
    %162 = vector.extract_strided_slice %158 {offsets = [0, 0], sizes = [4, 32], strides = [1, 1]} : vector<4x96xf32> to vector<4x32xf32>
    %163 = vector.extract_strided_slice %161 {offsets = [0, 0], sizes = [4, 32], strides = [1, 1]} : vector<4x96xf32> to vector<4x32xf32>
    %164 = arith.addf %162, %163 : vector<4x32xf32>
    %165 = arith.negf %164 : vector<4x32xf32>
    %166 = math.exp %165 : vector<4x32xf32>
    %cst_28 = arith.constant 1.000000e+00 : f32
    %167 = vector.broadcast %cst_28 : f32 to vector<4x32xf32>
    %168 = arith.addf %167, %166 : vector<4x32xf32>
    %169 = arith.divf %167, %168 : vector<4x32xf32>
    %170 = vector.extract_strided_slice %158 {offsets = [0, 32], sizes = [4, 32], strides = [1, 1]} : vector<4x96xf32> to vector<4x32xf32>
    %171 = vector.extract_strided_slice %161 {offsets = [0, 32], sizes = [4, 32], strides = [1, 1]} : vector<4x96xf32> to vector<4x32xf32>
    %172 = arith.addf %170, %171 : vector<4x32xf32>
    %173 = arith.negf %172 : vector<4x32xf32>
    %174 = math.exp %173 : vector<4x32xf32>
    %cst_29 = arith.constant 1.000000e+00 : f32
    %175 = vector.broadcast %cst_29 : f32 to vector<4x32xf32>
    %176 = arith.addf %175, %174 : vector<4x32xf32>
    %177 = arith.divf %175, %176 : vector<4x32xf32>
    %178 = vector.extract_strided_slice %158 {offsets = [0, 64], sizes = [4, 32], strides = [1, 1]} : vector<4x96xf32> to vector<4x32xf32>
    %179 = vector.extract_strided_slice %161 {offsets = [0, 64], sizes = [4, 32], strides = [1, 1]} : vector<4x96xf32> to vector<4x32xf32>
    %180 = arith.mulf %169, %179 : vector<4x32xf32>
    %181 = arith.addf %178, %180 : vector<4x32xf32>
    %182 = math.tanh %181 : vector<4x32xf32>
    %183 = arith.subf %155, %182 : vector<4x32xf32>
    %184 = arith.mulf %177, %183 : vector<4x32xf32>
    %185 = arith.addf %182, %184 : vector<4x32xf32>
    %186 = vector.broadcast %c4_i32 : i32 to vector<4x1xi32>
    %187 = arith.cmpi sgt, %2, %186 : vector<4x1xi32>
    %188 = arith.extui %187 : vector<4x1xi1> to vector<4x1xi32>
    %189 = arith.sitofp %188 : vector<4x1xi32> to vector<4x1xf32>
    %190 = arith.subf %185, %155 : vector<4x32xf32>
    %191 = vector.broadcast %189 : vector<4x1xf32> to vector<4x32xf32>
    %192 = arith.mulf %191, %190 : vector<4x32xf32>
    %193 = arith.addf %155, %192 : vector<4x32xf32>
    %c5_i32 = arith.constant 5 : i32
    %194 = arith.index_cast %c5_i32 : i32 to index
    %c0_30 = arith.constant 0 : index
    %c0_31 = arith.constant 0 : index
    %195 = vector.load %arg0[%194, %c0_30, %c0_31] : memref<8x4x96xf32, #tpu.memory_space<vmem>>, vector<1x4x96xf32>
    %196 = vector.shape_cast %195 : vector<1x4x96xf32> to vector<4x96xf32>
    %cst_32 = arith.constant dense<0.000000e+00> : vector<4x96xf32>
    %197 = tpu.matmul %193, %0, %cst_32 {dimension_numbers = #tpu.dot_dimension_numbers<[1], [0], [0], [1], [0, 0, 1, 1], [], []>} : vector<4x32xf32>, vector<32x96xf32>, vector<4x96xf32> -> vector<4x96xf32>
    %198 = vector.broadcast %1 : vector<1x96xf32> to vector<4x96xf32>
    %199 = arith.addf %197, %198 : vector<4x96xf32>
    %200 = vector.extract_strided_slice %196 {offsets = [0, 0], sizes = [4, 32], strides = [1, 1]} : vector<4x96xf32> to vector<4x32xf32>
    %201 = vector.extract_strided_slice %199 {offsets = [0, 0], sizes = [4, 32], strides = [1, 1]} : vector<4x96xf32> to vector<4x32xf32>
    %202 = arith.addf %200, %201 : vector<4x32xf32>
    %203 = arith.negf %202 : vector<4x32xf32>
    %204 = math.exp %203 : vector<4x32xf32>
    %cst_33 = arith.constant 1.000000e+00 : f32
    %205 = vector.broadcast %cst_33 : f32 to vector<4x32xf32>
    %206 = arith.addf %205, %204 : vector<4x32xf32>
    %207 = arith.divf %205, %206 : vector<4x32xf32>
    %208 = vector.extract_strided_slice %196 {offsets = [0, 32], sizes = [4, 32], strides = [1, 1]} : vector<4x96xf32> to vector<4x32xf32>
    %209 = vector.extract_strided_slice %199 {offsets = [0, 32], sizes = [4, 32], strides = [1, 1]} : vector<4x96xf32> to vector<4x32xf32>
    %210 = arith.addf %208, %209 : vector<4x32xf32>
    %211 = arith.negf %210 : vector<4x32xf32>
    %212 = math.exp %211 : vector<4x32xf32>
    %cst_34 = arith.constant 1.000000e+00 : f32
    %213 = vector.broadcast %cst_34 : f32 to vector<4x32xf32>
    %214 = arith.addf %213, %212 : vector<4x32xf32>
    %215 = arith.divf %213, %214 : vector<4x32xf32>
    %216 = vector.extract_strided_slice %196 {offsets = [0, 64], sizes = [4, 32], strides = [1, 1]} : vector<4x96xf32> to vector<4x32xf32>
    %217 = vector.extract_strided_slice %199 {offsets = [0, 64], sizes = [4, 32], strides = [1, 1]} : vector<4x96xf32> to vector<4x32xf32>
    %218 = arith.mulf %207, %217 : vector<4x32xf32>
    %219 = arith.addf %216, %218 : vector<4x32xf32>
    %220 = math.tanh %219 : vector<4x32xf32>
    %221 = arith.subf %193, %220 : vector<4x32xf32>
    %222 = arith.mulf %215, %221 : vector<4x32xf32>
    %223 = arith.addf %220, %222 : vector<4x32xf32>
    %224 = vector.broadcast %c5_i32 : i32 to vector<4x1xi32>
    %225 = arith.cmpi sgt, %2, %224 : vector<4x1xi32>
    %226 = arith.extui %225 : vector<4x1xi1> to vector<4x1xi32>
    %227 = arith.sitofp %226 : vector<4x1xi32> to vector<4x1xf32>
    %228 = arith.subf %223, %193 : vector<4x32xf32>
    %229 = vector.broadcast %227 : vector<4x1xf32> to vector<4x32xf32>
    %230 = arith.mulf %229, %228 : vector<4x32xf32>
    %231 = arith.addf %193, %230 : vector<4x32xf32>
    %c6_i32 = arith.constant 6 : i32
    %232 = arith.index_cast %c6_i32 : i32 to index
    %c0_35 = arith.constant 0 : index
    %c0_36 = arith.constant 0 : index
    %233 = vector.load %arg0[%232, %c0_35, %c0_36] : memref<8x4x96xf32, #tpu.memory_space<vmem>>, vector<1x4x96xf32>
    %234 = vector.shape_cast %233 : vector<1x4x96xf32> to vector<4x96xf32>
    %cst_37 = arith.constant dense<0.000000e+00> : vector<4x96xf32>
    %235 = tpu.matmul %231, %0, %cst_37 {dimension_numbers = #tpu.dot_dimension_numbers<[1], [0], [0], [1], [0, 0, 1, 1], [], []>} : vector<4x32xf32>, vector<32x96xf32>, vector<4x96xf32> -> vector<4x96xf32>
    %236 = vector.broadcast %1 : vector<1x96xf32> to vector<4x96xf32>
    %237 = arith.addf %235, %236 : vector<4x96xf32>
    %238 = vector.extract_strided_slice %234 {offsets = [0, 0], sizes = [4, 32], strides = [1, 1]} : vector<4x96xf32> to vector<4x32xf32>
    %239 = vector.extract_strided_slice %237 {offsets = [0, 0], sizes = [4, 32], strides = [1, 1]} : vector<4x96xf32> to vector<4x32xf32>
    %240 = arith.addf %238, %239 : vector<4x32xf32>
    %241 = arith.negf %240 : vector<4x32xf32>
    %242 = math.exp %241 : vector<4x32xf32>
    %cst_38 = arith.constant 1.000000e+00 : f32
    %243 = vector.broadcast %cst_38 : f32 to vector<4x32xf32>
    %244 = arith.addf %243, %242 : vector<4x32xf32>
    %245 = arith.divf %243, %244 : vector<4x32xf32>
    %246 = vector.extract_strided_slice %234 {offsets = [0, 32], sizes = [4, 32], strides = [1, 1]} : vector<4x96xf32> to vector<4x32xf32>
    %247 = vector.extract_strided_slice %237 {offsets = [0, 32], sizes = [4, 32], strides = [1, 1]} : vector<4x96xf32> to vector<4x32xf32>
    %248 = arith.addf %246, %247 : vector<4x32xf32>
    %249 = arith.negf %248 : vector<4x32xf32>
    %250 = math.exp %249 : vector<4x32xf32>
    %cst_39 = arith.constant 1.000000e+00 : f32
    %251 = vector.broadcast %cst_39 : f32 to vector<4x32xf32>
    %252 = arith.addf %251, %250 : vector<4x32xf32>
    %253 = arith.divf %251, %252 : vector<4x32xf32>
    %254 = vector.extract_strided_slice %234 {offsets = [0, 64], sizes = [4, 32], strides = [1, 1]} : vector<4x96xf32> to vector<4x32xf32>
    %255 = vector.extract_strided_slice %237 {offsets = [0, 64], sizes = [4, 32], strides = [1, 1]} : vector<4x96xf32> to vector<4x32xf32>
    %256 = arith.mulf %245, %255 : vector<4x32xf32>
    %257 = arith.addf %254, %256 : vector<4x32xf32>
    %258 = math.tanh %257 : vector<4x32xf32>
    %259 = arith.subf %231, %258 : vector<4x32xf32>
    %260 = arith.mulf %253, %259 : vector<4x32xf32>
    %261 = arith.addf %258, %260 : vector<4x32xf32>
    %262 = vector.broadcast %c6_i32 : i32 to vector<4x1xi32>
    %263 = arith.cmpi sgt, %2, %262 : vector<4x1xi32>
    %264 = arith.extui %263 : vector<4x1xi1> to vector<4x1xi32>
    %265 = arith.sitofp %264 : vector<4x1xi32> to vector<4x1xf32>
    %266 = arith.subf %261, %231 : vector<4x32xf32>
    %267 = vector.broadcast %265 : vector<4x1xf32> to vector<4x32xf32>
    %268 = arith.mulf %267, %266 : vector<4x32xf32>
    %269 = arith.addf %231, %268 : vector<4x32xf32>
    %c7_i32 = arith.constant 7 : i32
    %270 = arith.index_cast %c7_i32 : i32 to index
    %c0_40 = arith.constant 0 : index
    %c0_41 = arith.constant 0 : index
    %271 = vector.load %arg0[%270, %c0_40, %c0_41] : memref<8x4x96xf32, #tpu.memory_space<vmem>>, vector<1x4x96xf32>
    %272 = vector.shape_cast %271 : vector<1x4x96xf32> to vector<4x96xf32>
    %cst_42 = arith.constant dense<0.000000e+00> : vector<4x96xf32>
    %273 = tpu.matmul %269, %0, %cst_42 {dimension_numbers = #tpu.dot_dimension_numbers<[1], [0], [0], [1], [0, 0, 1, 1], [], []>} : vector<4x32xf32>, vector<32x96xf32>, vector<4x96xf32> -> vector<4x96xf32>
    %274 = vector.broadcast %1 : vector<1x96xf32> to vector<4x96xf32>
    %275 = arith.addf %273, %274 : vector<4x96xf32>
    %276 = vector.extract_strided_slice %272 {offsets = [0, 0], sizes = [4, 32], strides = [1, 1]} : vector<4x96xf32> to vector<4x32xf32>
    %277 = vector.extract_strided_slice %275 {offsets = [0, 0], sizes = [4, 32], strides = [1, 1]} : vector<4x96xf32> to vector<4x32xf32>
    %278 = arith.addf %276, %277 : vector<4x32xf32>
    %279 = arith.negf %278 : vector<4x32xf32>
    %280 = math.exp %279 : vector<4x32xf32>
    %cst_43 = arith.constant 1.000000e+00 : f32
    %281 = vector.broadcast %cst_43 : f32 to vector<4x32xf32>
    %282 = arith.addf %281, %280 : vector<4x32xf32>
    %283 = arith.divf %281, %282 : vector<4x32xf32>
    %284 = vector.extract_strided_slice %272 {offsets = [0, 32], sizes = [4, 32], strides = [1, 1]} : vector<4x96xf32> to vector<4x32xf32>
    %285 = vector.extract_strided_slice %275 {offsets = [0, 32], sizes = [4, 32], strides = [1, 1]} : vector<4x96xf32> to vector<4x32xf32>
    %286 = arith.addf %284, %285 : vector<4x32xf32>
    %287 = arith.negf %286 : vector<4x32xf32>
    %288 = math.exp %287 : vector<4x32xf32>
    %cst_44 = arith.constant 1.000000e+00 : f32
    %289 = vector.broadcast %cst_44 : f32 to vector<4x32xf32>
    %290 = arith.addf %289, %288 : vector<4x32xf32>
    %291 = arith.divf %289, %290 : vector<4x32xf32>
    %292 = vector.extract_strided_slice %272 {offsets = [0, 64], sizes = [4, 32], strides = [1, 1]} : vector<4x96xf32> to vector<4x32xf32>
    %293 = vector.extract_strided_slice %275 {offsets = [0, 64], sizes = [4, 32], strides = [1, 1]} : vector<4x96xf32> to vector<4x32xf32>
    %294 = arith.mulf %283, %293 : vector<4x32xf32>
    %295 = arith.addf %292, %294 : vector<4x32xf32>
    %296 = math.tanh %295 : vector<4x32xf32>
    %297 = arith.subf %269, %296 : vector<4x32xf32>
    %298 = arith.mulf %291, %297 : vector<4x32xf32>
    %299 = arith.addf %296, %298 : vector<4x32xf32>
    %300 = vector.broadcast %c7_i32 : i32 to vector<4x1xi32>
    %301 = arith.cmpi sgt, %2, %300 : vector<4x1xi32>
    %302 = arith.extui %301 : vector<4x1xi1> to vector<4x1xi32>
    %303 = arith.sitofp %302 : vector<4x1xi32> to vector<4x1xf32>
    %304 = arith.subf %299, %269 : vector<4x32xf32>
    %305 = vector.broadcast %303 : vector<4x1xf32> to vector<4x32xf32>
    %306 = arith.mulf %305, %304 : vector<4x32xf32>
    %307 = arith.addf %269, %306 : vector<4x32xf32>
    %c8_i32 = arith.constant 8 : i32
    %c0_45 = arith.constant 0 : index
    %c0_46 = arith.constant 0 : index
    %308 = vector.load %arg4[%c0_45, %c0_46] : memref<32x32xf32, #tpu.memory_space<vmem>>, vector<32x32xf32>
    %cst_47 = arith.constant dense<0.000000e+00> : vector<4x32xf32>
    %309 = tpu.matmul %307, %308, %cst_47 {dimension_numbers = #tpu.dot_dimension_numbers<[1], [0], [0], [1], [0, 0, 1, 1], [], []>} : vector<4x32xf32>, vector<32x32xf32>, vector<4x32xf32> -> vector<4x32xf32>
    %c0_48 = arith.constant 0 : index
    %c0_49 = arith.constant 0 : index
    %310 = vector.load %arg5[%c0_48, %c0_49] : memref<1x32xf32, #tpu.memory_space<vmem>>, vector<1x32xf32>
    %311 = vector.broadcast %310 : vector<1x32xf32> to vector<4x32xf32>
    %312 = arith.addf %309, %311 : vector<4x32xf32>
    %313 = arith.mulf %312, %312 : vector<4x32xf32>
    %cst_50 = arith.constant dense<0.000000e+00> : vector<4xf32>
    %314 = vector.multi_reduction <add>, %313, %cst_50 [1] : vector<4x32xf32> to vector<4xf32>
    %315 = vector.shape_cast %314 : vector<4xf32> to vector<4x1xf32>
    %316 = math.sqrt %315 : vector<4x1xf32>
    %cst_51 = arith.constant 9.99999971E-10 : f32
    %317 = vector.broadcast %cst_51 : f32 to vector<4x1xf32>
    %318 = arith.addf %316, %317 : vector<4x1xf32>
    %319 = vector.broadcast %318 : vector<4x1xf32> to vector<4x32xf32>
    %320 = arith.divf %312, %319 : vector<4x32xf32>
    %c0_52 = arith.constant 0 : index
    %c0_53 = arith.constant 0 : index
    %321 = vector.load %arg6[%c0_52, %c0_53] : memref<4x32xf32, #tpu.memory_space<vmem>>, vector<4x32xf32>
    tpu.vector_store %arg6[%c0_52, %c0_53], %320 {strides = array<i32>} : memref<4x32xf32, #tpu.memory_space<vmem>>, vector<4x32xf32>,
    return
  }
}

</mosaic_0001>

<llo_original>
// kernel: tpu_custom_call.1
$region0: #{tpu_custom_call.1}
  #allocation0 [shape = 'u32[]', space=smem, size = 0x4, offset = 0x4, fixed_abs, tag = 'smem constant byte address 0x4 - core index']
  #allocation1 [shape = 'u32[144,128]{1,0:T(1,128)}', space=vmem, size = 0x12000, scoped, tag = 'internal scratch']
  %s0 = inlined_call_operand.hbm [shape: f32[8,4,96], index: 0, kind: input, shape index: {}]
  %s1 = inlined_call_operand.vmem [shape: s32[4,1], index: 1, kind: input, shape index: {}]
  %s2 = inlined_call_operand.hbm [shape: f32[32,96], index: 2, kind: input, shape index: {}]
  %s3 = inlined_call_operand.vmem [shape: f32[1,96], index: 3, kind: input, shape index: {}]
  %s4 = inlined_call_operand.hbm [shape: f32[32,32], index: 4, kind: input, shape index: {}]
  %s5 = inlined_call_operand.vmem [shape: f32[1,32], index: 5, kind: input, shape index: {}]
  %s6 = inlined_call_operand.hbm [shape: f32[4,32], index: 6, kind: output, shape index: {}]
  %s7 = sld [smem:[#allocation0]]
  $region46: #{tpu_custom_call.1} parent=0
    _
  %s9 = ssub.s32 1, %s7
  %s10 = scalar_select 0, %s9, %s7
  $region1: #{tpu_custom_call.1} parent=0
    #allocation2 [shape = 'u8[16384]{0}', space=vmem, size = 0x4000, scoped, tag = 'input window, operand 0, single buffered']
    #allocation3 [shape = 's32[1]{0}', space=sflag, size = 0x4, scoped, tag = 'scoped memory for tpu_custom_call.1']
    #allocation4 [shape = 's32[1]{0}', space=sflag, size = 0x4, scoped, tag = 'scoped memory for tpu_custom_call.1']
    #allocation5 [shape = 'u8[16384]{0}', space=vmem, size = 0x4000, scoped, tag = 'input window, operand 2, single buffered']
    #allocation6 [shape = 's32[1]{0}', space=sflag, size = 0x4, scoped, tag = 'scoped memory for tpu_custom_call.1']
    #allocation7 [shape = 'u8[16384]{0}', space=vmem, size = 0x4000, scoped, tag = 'input window, operand 4, single buffered']
    #allocation8 [shape = 'u8[2048]{0}', space=vmem, size = 0x800, scoped, tag = 'output window, operand 0, single buffered']
    %11 = vsyncpa [#allocation3], 0
    %12 = vsyncpa [#allocation6], 0
    %13 = vsyncpa [#allocation4], 0
    // Predicated region
    $region2: #{tpu_custom_call.1} parent=1 // pred_check
      _
    $region3: #{tpu_custom_call.1} parent=1 // pred_check_branch
      %15 = sbr.rel (0) target = $region5
    $region4: #{tpu_custom_call.1} parent=1 // pred_region
      %s17 = ssub.s32 512, 512
      %18 = vsyncadd [#allocation3], %s17
      %s19 = sshll.u32 [#allocation2], 4
      %s20 = int_to_ptr.vmem [resolvable:$true] %s19
      %25 = dma.hbm_to_vmem [thread:$0]  %s0, 512, %s20, [#allocation3], 64, 64, 4
    $region5: #{tpu_custom_call.1} parent=1 // pred_fallthru
      _
    // Predicated region
    $region6: #{tpu_custom_call.1} parent=1 // pred_check
      _
    $region7: #{tpu_custom_call.1} parent=1 // pred_check_branch
      %27 = sbr.rel (0) target = $region9
    $region8: #{tpu_custom_call.1} parent=1 // pred_region
      _
    $region9: #{tpu_custom_call.1} parent=1 // pred_fallthru
      _
    // Predicated region
    $region10: #{tpu_custom_call.1} parent=1 // pred_check
      _
    $region11: #{tpu_custom_call.1} parent=1 // pred_check_branch
      %29 = sbr.rel (0) target = $region13
    $region12: #{tpu_custom_call.1} parent=1 // pred_region
      %s31 = ssub.s32 512, 512
      %32 = vsyncadd [#allocation6], %s31
      %s33 = sshll.u32 [#allocation5], 4
      %s34 = int_to_ptr.vmem [resolvable:$true] %s33
      %39 = dma.hbm_to_vmem [thread:$0]  %s2, 512, %s34, [#allocation6], 128, 128, 8
    $region13: #{tpu_custom_call.1} parent=1 // pred_fallthru
      _
    // Predicated region
    $region14: #{tpu_custom_call.1} parent=1 // pred_check
      _
    $region15: #{tpu_custom_call.1} parent=1 // pred_check_branch
      %41 = sbr.rel (0) target = $region17
    $region16: #{tpu_custom_call.1} parent=1 // pred_region
      _
    $region17: #{tpu_custom_call.1} parent=1 // pred_fallthru
      _
    // Predicated region
    $region18: #{tpu_custom_call.1} parent=1 // pred_check
      _
    $region19: #{tpu_custom_call.1} parent=1 // pred_check_branch
      %43 = sbr.rel (0) target = $region21
    $region20: #{tpu_custom_call.1} parent=1 // pred_region
      %s45 = ssub.s32 512, 512
      %46 = vsyncadd [#allocation6], %s45
      %s47 = sshll.u32 [#allocation7], 4
      %s48 = int_to_ptr.vmem [resolvable:$true] %s47
      %53 = dma.hbm_to_vmem [thread:$0]  %s4, 512, %s48, [#allocation6], 128, 128, 8
    $region21: #{tpu_custom_call.1} parent=1 // pred_fallthru
      _
    // Predicated region
    $region22: #{tpu_custom_call.1} parent=1 // pred_check
      _
    $region23: #{tpu_custom_call.1} parent=1 // pred_check_branch
      %55 = sbr.rel (0) target = $region25
    $region24: #{tpu_custom_call.1} parent=1 // pred_region
      _
    $region25: #{tpu_custom_call.1} parent=1 // pred_fallthru
      _
    // Predicated region
    $region26: #{tpu_custom_call.1} parent=1 // pred_check
      _
    $region27: #{tpu_custom_call.1} parent=1 // pred_check_branch
      %57 = sbr.rel (0) target = $region29
    $region28: #{tpu_custom_call.1} parent=1 // pred_region
      %58 = dma.done [#allocation3], 512
    $region29: #{tpu_custom_call.1} parent=1 // pred_fallthru
      _
    // Predicated region
    $region30: #{tpu_custom_call.1} parent=1 // pred_check
      _
    $region31: #{tpu_custom_call.1} parent=1 // pred_check_branch
      %60 = sbr.rel (0) target = $region33
    $region32: #{tpu_custom_call.1} parent=1 // pred_region
      %61 = dma.done [#allocation6], 512
    $region33: #{tpu_custom_call.1} parent=1 // pred_fallthru
      _
    // Predicated region
    $region34: #{tpu_custom_call.1} parent=1 // pred_check
      _
    $region35: #{tpu_custom_call.1} parent=1 // pred_check_branch
      %63 = sbr.rel (0) target = $region37
    $region36: #{tpu_custom_call.1} parent=1 // pred_region
      %64 = dma.done [#allocation6], 512
    $region37: #{tpu_custom_call.1} parent=1 // pred_fallthru
      _
    %v65 = vld [vmem:[#allocation5] sm:$0xff]
    %v66 = vld [vmem:[#allocation5 + $0x8] sm:$0xff]
    %v67 = vld [vmem:[#allocation5 + $0x10] sm:$0xff]
    %v68 = vld [vmem:[#allocation5 + $0x18] sm:$0xff]
    %v69 = vld [vmem:[%s3] sm:$0x1]
    %v70 = vld [vmem:[%s1] sm:$0xf]
    %v71 = vld [vmem:[#allocation2] sm:$0xf]
    %v73 = vlaneseq
    %v74 = vshrl.u32 %v73, 7
    %v75 = vsub.s32 0, %v74
    %v76 = vrot.slane %v69, %v75
    %vm78 = vcmask 261120
    %v80 = vsel %vm78, 0.0, 0
    %82 = vmatprep.subr.mxu0 0.0
    %83 = vmatpush1.msra.mxu0 %v65
    %84 = vmatprep.subr.mxu0 0.0
    %85 = vmatpush1.msra.mxu0 %v66
    %86 = vmatprep.subr.mxu0 0.0
    %87 = vmatpush1.msra.mxu0 %v67
    %88 = vmatprep.subr.mxu0 0.0
    %89 = vmatpush1.msra.mxu0 %v68
    %90 = vmatprep.subr.mxu0 0.0
    %91 = vmatpush1.msra.mxu0 0.0
    %92 = vmatprep.subr.mxu0 0.0
    %93 = vmatpush1.msra.mxu0 0.0
    %94 = vmatprep.subr.mxu0 0.0
    %95 = vmatpush1.msra.mxu0 0.0
    %96 = vmatprep.subr.mxu0 0.0
    %97 = vmatpush1.msra.mxu0 0.0
    %98 = vmatprep.subr.mxu0 0.0
    %99 = vmatpush1.msra.mxu0 0.0
    %100 = vmatprep.subr.mxu0 0.0
    %101 = vmatpush1.msra.mxu0 0.0
    %102 = vmatprep.subr.mxu0 0.0
    %103 = vmatpush1.msra.mxu0 0.0
    %104 = vmatprep.subr.mxu0 0.0
    %105 = vmatpush1.msra.mxu0 0.0
    %106 = vmatprep.subr.mxu0 0.0
    %107 = vmatpush1.msra.mxu0 0.0
    %108 = vmatprep.subr.mxu0 0.0
    %109 = vmatpush1.msra.mxu0 0.0
    %110 = vmatprep.subr.mxu0 0.0
    %111 = vmatpush1.msra.mxu0 0.0
    %112 = vmatprep.subr.mxu0 0.0
    %113 = vmatpush1.msra.mxu0 0.0
    %114 = vmatprep.subr.mxu0 0.0
    %115 = vmatpush1.msra.mxu0 0.0
    %116 = vmatprep.subr.mxu0 0.0
    %117 = vmatpush1.msra.mxu0 0.0
    %118 = vmatprep.subr.mxu0 0.0
    %119 = vmatpush1.msra.mxu0 0.0
    %120 = vmatprep.subr.mxu0 0.0
    %121 = vmatpush1.msra.mxu0 0.0
    %122 = vmatprep.subr.mxu0 0.0
    %123 = vmatpush1.msra.mxu0 0.0
    %124 = vmatprep.subr.mxu0 0.0
    %125 = vmatpush1.msra.mxu0 0.0
    %126 = vmatprep.subr.mxu0 0.0
    %127 = vmatpush1.msra.mxu0 0.0
    %128 = vmatprep.subr.mxu0 0.0
    %129 = vmatpush1.msra.mxu0 0.0
    %130 = vmatprep.subr.mxu0 0.0
    %131 = vmatpush1.msra.mxu0 0.0
    %132 = vmatprep.subr.mxu0 0.0
    %133 = vmatpush1.msra.mxu0 0.0
    %134 = vmatprep.subr.mxu0 0.0
    %135 = vmatpush1.msra.mxu0 0.0
    %136 = vmatprep.subr.mxu0 0.0
    %137 = vmatpush1.msra.mxu0 0.0
    %138 = vmatprep.subr.mxu0 0.0
    %139 = vmatpush1.msra.mxu0 0.0
    %140 = vmatprep.subr.mxu0 0.0
    %141 = vmatpush1.msra.mxu0 0.0
    %142 = vmatprep.subr.mxu0 0.0
    %143 = vmatpush1.msra.mxu0 0.0
    %144 = vmatprep.subr.mxu0 0.0
    %145 = vmatpush1.msra.mxu0 0.0
    %146 = vmatprep.mubr.f32.mxu0 0.0
    %147 = vmatmul.mubr.f32.gmra.mrb[0].mxu0 %v80
    %v148 = vpop.f32.mrb[0].mxu0
    %v149 = vadd.f32 %v76, %v148
    %v150 = vpop.f32.mrb[0].mxu0
    %151 = vdwg.mxu0
    %v152 = vadd.f32 %v71, %v149
    %v153 = vxor.u32 %v152, 2147483648
    %v154 = vmul.f32 %v153, 1.442695
    %v155 = vpow.pop %v154
    %v156 = vadd.f32 %v155, 1.0
    %v157 = vrcp.pop %v156
    %v158 = vmul.f32 1.0, %v157
    %160 = vrot.lane.b32.xlu0 %v149, 64
    %v161 = vpop.permute.xlu0 %160
    %v163 = vmul.f32 %v158, %v161
    %165 = vrot.lane.b32.xlu0 %v163, 64
    %v166 = vpop.permute.xlu0 %165
    %v168 = vadd.f32 %v71, %v166
    %v169 = vtanh.pop %v168
    %v170 = vsub.f32 0.0, %v169
    %172 = vrot.lane.b32.xlu0 %v170, 96
    %v173 = vpop.permute.xlu0 %172
    %v175 = vmul.f32 %v158, %v173
    %177 = vrot.lane.b32.xlu0 %v175, 32
    %v178 = vpop.permute.xlu0 %177
    %v180 = vadd.f32 %v169, %v178
    %vm181 = vcmp.gt.s32.totalorder %v70, 0
    %v182 = vsel %vm181, 1, 0
    %v183 = vcvt.s32.f32 %v182
    %185 = vset.pattern.permute.xlu0 0
    %186 = vperm.xlu0 %185, %v183
    %v187 = vpop.permute.xlu0 %186
    %v189 = vmul.f32 %v187, %v180
    %v190 = vadd.f32 %v189, 0.0
    %s191 = scalar_lea.vmem [#allocation2], 4
    %v192 = vld [vmem:[%s191] sm:$0xf]
    %194 = vrot.lane.b32.xlu0 %v190, 64
    %v195 = vpop.permute.xlu0 %194
    %v196 = vsel %vm78, %v195, 0
    %198 = vmatprep.subr.mxu0 0.0
    %199 = vmatpush1.msra.mxu0 %v65
    %200 = vmatprep.subr.mxu0 0.0
    %201 = vmatpush1.msra.mxu0 %v66
    %202 = vmatprep.subr.mxu0 0.0
    %203 = vmatpush1.msra.mxu0 %v67
    %204 = vmatprep.subr.mxu0 0.0
    %205 = vmatpush1.msra.mxu0 %v68
    %206 = vmatprep.subr.mxu0 0.0
    %207 = vmatpush1.msra.mxu0 0.0
    %208 = vmatprep.subr.mxu0 0.0
    %209 = vmatpush1.msra.mxu0 0.0
    %210 = vmatprep.subr.mxu0 0.0
    %211 = vmatpush1.msra.mxu0 0.0
    %212 = vmatprep.subr.mxu0 0.0
    %213 = vmatpush1.msra.mxu0 0.0
    %214 = vmatprep.subr.mxu0 0.0
    %215 = vmatpush1.msra.mxu0 0.0
    %216 = vmatprep.subr.mxu0 0.0
    %217 = vmatpush1.msra.mxu0 0.0
    %218 = vmatprep.subr.mxu0 0.0
    %219 = vmatpush1.msra.mxu0 0.0
    %220 = vmatprep.subr.mxu0 0.0
    %221 = vmatpush1.msra.mxu0 0.0
    %222 = vmatprep.subr.mxu0 0.0
    %223 = vmatpush1.msra.mxu0 0.0
    %224 = vmatprep.subr.mxu0 0.0
    %225 = vmatpush1.msra.mxu0 0.0
    %226 = vmatprep.subr.mxu0 0.0
    %227 = vmatpush1.msra.mxu0 0.0
    %228 = vmatprep.subr.mxu0 0.0
    %229 = vmatpush1.msra.mxu0 0.0
    %230 = vmatprep.subr.mxu0 0.0
    %231 = vmatpush1.msra.mxu0 0.0
    %232 = vmatprep.subr.mxu0 0.0
    %233 = vmatpush1.msra.mxu0 0.0
    %234 = vmatprep.subr.mxu0 0.0
    %235 = vmatpush1.msra.mxu0 0.0
    %236 = vmatprep.subr.mxu0 0.0
    %237 = vmatpush1.msra.mxu0 0.0
    %238 = vmatprep.subr.mxu0 0.0
    %239 = vmatpush1.msra.mxu0 0.0
    %240 = vmatprep.subr.mxu0 0.0
    %241 = vmatpush1.msra.mxu0 0.0
    %242 = vmatprep.subr.mxu0 0.0
    %243 = vmatpush1.msra.mxu0 0.0
    %244 = vmatprep.subr.mxu0 0.0
    %245 = vmatpush1.msra.mxu0 0.0
    %246 = vmatprep.subr.mxu0 0.0
    %247 = vmatpush1.msra.mxu0 0.0
    %248 = vmatprep.subr.mxu0 0.0
    %249 = vmatpush1.msra.mxu0 0.0
    %250 = vmatprep.subr.mxu0 0.0
    %251 = vmatpush1.msra.mxu0 0.0
    %252 = vmatprep.subr.mxu0 0.0
    %253 = vmatpush1.msra.mxu0 0.0
    %254 = vmatprep.subr.mxu0 0.0
    %255 = vmatpush1.msra.mxu0 0.0
    %256 = vmatprep.subr.mxu0 0.0
    %257 = vmatpush1.msra.mxu0 0.0
    %258 = vmatprep.subr.mxu0 0.0
    %259 = vmatpush1.msra.mxu0 0.0
    %260 = vmatprep.subr.mxu0 0.0
    %261 = vmatpush1.msra.mxu0 0.0
    %262 = vmatprep.mubr.f32.mxu0 0.0
    %263 = vmatmul.mubr.f32.gmra.mrb[0].mxu0 %v196
    %v264 = vpop.f32.mrb[0].mxu0
    %v265 = vadd.f32 %v76, %v264
    %v266 = vpop.f32.mrb[0].mxu0
    %267 = vdwg.mxu0
    %v268 = vadd.f32 %v192, %v265
    %v269 = vxor.u32 %v268, 2147483648
    %v270 = vmul.f32 %v269, 1.442695
    %v271 = vpow.pop %v270
    %v272 = vadd.f32 %v271, 1.0
    %v273 = vrcp.pop %v272
    %v274 = vmul.f32 1.0, %v273
    %276 = vrot.lane.b32.xlu0 %v265, 64
    %v277 = vpop.permute.xlu0 %276
    %v279 = vmul.f32 %v274, %v277
    %281 = vrot.lane.b32.xlu0 %v279, 64
    %v282 = vpop.permute.xlu0 %281
    %v284 = vadd.f32 %v192, %v282
    %v285 = vtanh.pop %v284
    %v286 = vsub.f32 %v190, %v285
    %288 = vrot.lane.b32.xlu0 %v286, 96
    %v289 = vpop.permute.xlu0 %288
    %v291 = vmul.f32 %v274, %v289
    %293 = vrot.lane.b32.xlu0 %v291, 32
    %v294 = vpop.permute.xlu0 %293
    %v296 = vadd.f32 %v285, %v294
    %vm297 = vcmp.gt.s32.totalorder %v70, 1
    %v298 = vsel %vm297, 1, 0
    %v299 = vcvt.s32.f32 %v298
    %v300 = vsub.f32 %v296, %v190
    %302 = vset.pattern.permute.xlu0 0
    %303 = vperm.xlu0 %302, %v299
    %v304 = vpop.permute.xlu0 %303
    %v306 = vmul.f32 %v304, %v300
    %v307 = vadd.f32 %v190, %v306
    %s308 = scalar_lea.vmem [#allocation2], 8
    %v309 = vld [vmem:[%s308] sm:$0xf]
    %311 = vrot.lane.b32.xlu0 %v307, 64
    %v312 = vpop.permute.xlu0 %311
    %v313 = vsel %vm78, %v312, 0
    %315 = vmatprep.subr.mxu0 0.0
    %316 = vmatpush1.msra.mxu0 %v65
    %317 = vmatprep.subr.mxu0 0.0
    %318 = vmatpush1.msra.mxu0 %v66
    %319 = vmatprep.subr.mxu0 0.0
    %320 = vmatpush1.msra.mxu0 %v67
    %321 = vmatprep.subr.mxu0 0.0
    %322 = vmatpush1.msra.mxu0 %v68
    %323 = vmatprep.subr.mxu0 0.0
    %324 = vmatpush1.msra.mxu0 0.0
    %325 = vmatprep.subr.mxu0 0.0
    %326 = vmatpush1.msra.mxu0 0.0
    %327 = vmatprep.subr.mxu0 0.0
    %328 = vmatpush1.msra.mxu0 0.0
    %329 = vmatprep.subr.mxu0 0.0
    %330 = vmatpush1.msra.mxu0 0.0
    %331 = vmatprep.subr.mxu0 0.0
    %332 = vmatpush1.msra.mxu0 0.0
    %333 = vmatprep.subr.mxu0 0.0
    %334 = vmatpush1.msra.mxu0 0.0
    %335 = vmatprep.subr.mxu0 0.0
    %336 = vmatpush1.msra.mxu0 0.0
    %337 = vmatprep.subr.mxu0 0.0
    %338 = vmatpush1.msra.mxu0 0.0
    %339 = vmatprep.subr.mxu0 0.0
    %340 = vmatpush1.msra.mxu0 0.0
    %341 = vmatprep.subr.mxu0 0.0
    %342 = vmatpush1.msra.mxu0 0.0
    %343 = vmatprep.subr.mxu0 0.0
    %344 = vmatpush1.msra.mxu0 0.0
    %345 = vmatprep.subr.mxu0 0.0
    %346 = vmatpush1.msra.mxu0 0.0
    %347 = vmatprep.subr.mxu0 0.0
    %348 = vmatpush1.msra.mxu0 0.0
    %349 = vmatprep.subr.mxu0 0.0
    %350 = vmatpush1.msra.mxu0 0.0
    %351 = vmatprep.subr.mxu0 0.0
    %352 = vmatpush1.msra.mxu0 0.0
    %353 = vmatprep.subr.mxu0 0.0
    %354 = vmatpush1.msra.mxu0 0.0
    %355 = vmatprep.subr.mxu0 0.0
    %356 = vmatpush1.msra.mxu0 0.0
    %357 = vmatprep.subr.mxu0 0.0
    %358 = vmatpush1.msra.mxu0 0.0
    %359 = vmatprep.subr.mxu0 0.0
    %360 = vmatpush1.msra.mxu0 0.0
    %361 = vmatprep.subr.mxu0 0.0
    %362 = vmatpush1.msra.mxu0 0.0
    %363 = vmatprep.subr.mxu0 0.0
    %364 = vmatpush1.msra.mxu0 0.0
    %365 = vmatprep.subr.mxu0 0.0
    %366 = vmatpush1.msra.mxu0 0.0
    %367 = vmatprep.subr.mxu0 0.0
    %368 = vmatpush1.msra.mxu0 0.0
    %369 = vmatprep.subr.mxu0 0.0
    %370 = vmatpush1.msra.mxu0 0.0
    %371 = vmatprep.subr.mxu0 0.0
    %372 = vmatpush1.msra.mxu0 0.0
    %373 = vmatprep.subr.mxu0 0.0
    %374 = vmatpush1.msra.mxu0 0.0
    %375 = vmatprep.subr.mxu0 0.0
    %376 = vmatpush1.msra.mxu0 0.0
    %377 = vmatprep.subr.mxu0 0.0
    %378 = vmatpush1.msra.mxu0 0.0
    %379 = vmatprep.mubr.f32.mxu0 0.0
    %380 = vmatmul.mubr.f32.gmra.mrb[0].mxu0 %v313
    %v381 = vpop.f32.mrb[0].mxu0
    %v382 = vadd.f32 %v76, %v381
    %v383 = vpop.f32.mrb[0].mxu0
    %384 = vdwg.mxu0
    %v385 = vadd.f32 %v309, %v382
    %v386 = vxor.u32 %v385, 2147483648
    %v387 = vmul.f32 %v386, 1.442695
    %v388 = vpow.pop %v387
    %v389 = vadd.f32 %v388, 1.0
    %v390 = vrcp.pop %v389
    %v391 = vmul.f32 1.0, %v390
    %393 = vrot.lane.b32.xlu0 %v382, 64
    %v394 = vpop.permute.xlu0 %393
    %v396 = vmul.f32 %v391, %v394
    %398 = vrot.lane.b32.xlu0 %v396, 64
    %v399 = vpop.permute.xlu0 %398
    %v401 = vadd.f32 %v309, %v399
    %v402 = vtanh.pop %v401
    %v403 = vsub.f32 %v307, %v402
    %405 = vrot.lane.b32.xlu0 %v403, 96
    %v406 = vpop.permute.xlu0 %405
    %v408 = vmul.f32 %v391, %v406
    %410 = vrot.lane.b32.xlu0 %v408, 32
    %v411 = vpop.permute.xlu0 %410
    %v413 = vadd.f32 %v402, %v411
    %vm414 = vcmp.gt.s32.totalorder %v70, 2
    %v415 = vsel %vm414, 1, 0
    %v416 = vcvt.s32.f32 %v415
    %v417 = vsub.f32 %v413, %v307
    %419 = vset.pattern.permute.xlu0 0
    %420 = vperm.xlu0 %419, %v416
    %v421 = vpop.permute.xlu0 %420
    %v423 = vmul.f32 %v421, %v417
    %v424 = vadd.f32 %v307, %v423
    %s425 = scalar_lea.vmem [#allocation2], 12
    %v426 = vld [vmem:[%s425] sm:$0xf]
    %428 = vrot.lane.b32.xlu0 %v424, 64
    %v429 = vpop.permute.xlu0 %428
    %v430 = vsel %vm78, %v429, 0
    %432 = vmatprep.subr.mxu0 0.0
    %433 = vmatpush1.msra.mxu0 %v65
    %434 = vmatprep.subr.mxu0 0.0
    %435 = vmatpush1.msra.mxu0 %v66
    %436 = vmatprep.subr.mxu0 0.0
    %437 = vmatpush1.msra.mxu0 %v67
    %438 = vmatprep.subr.mxu0 0.0
    %439 = vmatpush1.msra.mxu0 %v68
    %440 = vmatprep.subr.mxu0 0.0
    %441 = vmatpush1.msra.mxu0 0.0
    %442 = vmatprep.subr.mxu0 0.0
    %443 = vmatpush1.msra.mxu0 0.0
    %444 = vmatprep.subr.mxu0 0.0
    %445 = vmatpush1.msra.mxu0 0.0
    %446 = vmatprep.subr.mxu0 0.0
    %447 = vmatpush1.msra.mxu0 0.0
    %448 = vmatprep.subr.mxu0 0.0
    %449 = vmatpush1.msra.mxu0 0.0
    %450 = vmatprep.subr.mxu0 0.0
    %451 = vmatpush1.msra.mxu0 0.0
    %452 = vmatprep.subr.mxu0 0.0
    %453 = vmatpush1.msra.mxu0 0.0
    %454 = vmatprep.subr.mxu0 0.0
    %455 = vmatpush1.msra.mxu0 0.0
    %456 = vmatprep.subr.mxu0 0.0
    %457 = vmatpush1.msra.mxu0 0.0
    %458 = vmatprep.subr.mxu0 0.0
    %459 = vmatpush1.msra.mxu0 0.0
    %460 = vmatprep.subr.mxu0 0.0
    %461 = vmatpush1.msra.mxu0 0.0
    %462 = vmatprep.subr.mxu0 0.0
    %463 = vmatpush1.msra.mxu0 0.0
    %464 = vmatprep.subr.mxu0 0.0
    %465 = vmatpush1.msra.mxu0 0.0
    %466 = vmatprep.subr.mxu0 0.0
    %467 = vmatpush1.msra.mxu0 0.0
    %468 = vmatprep.subr.mxu0 0.0
    %469 = vmatpush1.msra.mxu0 0.0
    %470 = vmatprep.subr.mxu0 0.0
    %471 = vmatpush1.msra.mxu0 0.0
    %472 = vmatprep.subr.mxu0 0.0
    %473 = vmatpush1.msra.mxu0 0.0
    %474 = vmatprep.subr.mxu0 0.0
    %475 = vmatpush1.msra.mxu0 0.0
    %476 = vmatprep.subr.mxu0 0.0
    %477 = vmatpush1.msra.mxu0 0.0
    %478 = vmatprep.subr.mxu0 0.0
    %479 = vmatpush1.msra.mxu0 0.0
    %480 = vmatprep.subr.mxu0 0.0
    %481 = vmatpush1.msra.mxu0 0.0
    %482 = vmatprep.subr.mxu0 0.0
    %483 = vmatpush1.msra.mxu0 0.0
    %484 = vmatprep.subr.mxu0 0.0
    %485 = vmatpush1.msra.mxu0 0.0
    %486 = vmatprep.subr.mxu0 0.0
    %487 = vmatpush1.msra.mxu0 0.0
    %488 = vmatprep.subr.mxu0 0.0
    %489 = vmatpush1.msra.mxu0 0.0
    %490 = vmatprep.subr.mxu0 0.0
    %491 = vmatpush1.msra.mxu0 0.0
    %492 = vmatprep.subr.mxu0 0.0
    %493 = vmatpush1.msra.mxu0 0.0
    %494 = vmatprep.subr.mxu0 0.0
    %495 = vmatpush1.msra.mxu0 0.0
    %496 = vmatprep.mubr.f32.mxu0 0.0
    %497 = vmatmul.mubr.f32.gmra.mrb[0].mxu0 %v430
    %v498 = vpop.f32.mrb[0].mxu0
    %v499 = vadd.f32 %v76, %v498
    %v500 = vpop.f32.mrb[0].mxu0
    %501 = vdwg.mxu0
    %v502 = vadd.f32 %v426, %v499
    %v503 = vxor.u32 %v502, 2147483648
    %v504 = vmul.f32 %v503, 1.442695
    %v505 = vpow.pop %v504
    %v506 = vadd.f32 %v505, 1.0
    %v507 = vrcp.pop %v506
    %v508 = vmul.f32 1.0, %v507
    %510 = vrot.lane.b32.xlu0 %v499, 64
    %v511 = vpop.permute.xlu0 %510
    %v513 = vmul.f32 %v508, %v511
    %515 = vrot.lane.b32.xlu0 %v513, 64
    %v516 = vpop.permute.xlu0 %515
    %v518 = vadd.f32 %v426, %v516
    %v519 = vtanh.pop %v518
    %v520 = vsub.f32 %v424, %v519
    %522 = vrot.lane.b32.xlu0 %v520, 96
    %v523 = vpop.permute.xlu0 %522
    %v525 = vmul.f32 %v508, %v523
    %527 = vrot.lane.b32.xlu0 %v525, 32
    %v528 = vpop.permute.xlu0 %527
    %v530 = vadd.f32 %v519, %v528
    %vm531 = vcmp.gt.s32.totalorder %v70, 3
    %v532 = vsel %vm531, 1, 0
    %v533 = vcvt.s32.f32 %v532
    %v534 = vsub.f32 %v530, %v424
    %536 = vset.pattern.permute.xlu0 0
    %537 = vperm.xlu0 %536, %v533
    %v538 = vpop.permute.xlu0 %537
    %v540 = vmul.f32 %v538, %v534
    %v541 = vadd.f32 %v424, %v540
    %s542 = scalar_lea.vmem [#allocation2], 16
    %v543 = vld [vmem:[%s542] sm:$0xf]
    %545 = vrot.lane.b32.xlu0 %v541, 64
    %v546 = vpop.permute.xlu0 %545
    %v547 = vsel %vm78, %v546, 0
    %549 = vmatprep.subr.mxu0 0.0
    %550 = vmatpush1.msra.mxu0 %v65
    %551 = vmatprep.subr.mxu0 0.0
    %552 = vmatpush1.msra.mxu0 %v66
    %553 = vmatprep.subr.mxu0 0.0
    %554 = vmatpush1.msra.mxu0 %v67
    %555 = vmatprep.subr.mxu0 0.0
    %556 = vmatpush1.msra.mxu0 %v68
    %557 = vmatprep.subr.mxu0 0.0
    %558 = vmatpush1.msra.mxu0 0.0
    %559 = vmatprep.subr.mxu0 0.0
    %560 = vmatpush1.msra.mxu0 0.0
    %561 = vmatprep.subr.mxu0 0.0
    %562 = vmatpush1.msra.mxu0 0.0
    %563 = vmatprep.subr.mxu0 0.0
    %564 = vmatpush1.msra.mxu0 0.0
    %565 = vmatprep.subr.mxu0 0.0
    %566 = vmatpush1.msra.mxu0 0.0
    %567 = vmatprep.subr.mxu0 0.0
    %568 = vmatpush1.msra.mxu0 0.0
    %569 = vmatprep.subr.mxu0 0.0
    %570 = vmatpush1.msra.mxu0 0.0
    %571 = vmatprep.subr.mxu0 0.0
    %572 = vmatpush1.msra.mxu0 0.0
    %573 = vmatprep.subr.mxu0 0.0
    %574 = vmatpush1.msra.mxu0 0.0
    %575 = vmatprep.subr.mxu0 0.0
    %576 = vmatpush1.msra.mxu0 0.0
    %577 = vmatprep.subr.mxu0 0.0
    %578 = vmatpush1.msra.mxu0 0.0
    %579 = vmatprep.subr.mxu0 0.0
    %580 = vmatpush1.msra.mxu0 0.0
    %581 = vmatprep.subr.mxu0 0.0
    %582 = vmatpush1.msra.mxu0 0.0
    %583 = vmatprep.subr.mxu0 0.0
    %584 = vmatpush1.msra.mxu0 0.0
    %585 = vmatprep.subr.mxu0 0.0
    %586 = vmatpush1.msra.mxu0 0.0
    %587 = vmatprep.subr.mxu0 0.0
    %588 = vmatpush1.msra.mxu0 0.0
    %589 = vmatprep.subr.mxu0 0.0
    %590 = vmatpush1.msra.mxu0 0.0
    %591 = vmatprep.subr.mxu0 0.0
    %592 = vmatpush1.msra.mxu0 0.0
    %593 = vmatprep.subr.mxu0 0.0
    %594 = vmatpush1.msra.mxu0 0.0
    %595 = vmatprep.subr.mxu0 0.0
    %596 = vmatpush1.msra.mxu0 0.0
    %597 = vmatprep.subr.mxu0 0.0
    %598 = vmatpush1.msra.mxu0 0.0
    %599 = vmatprep.subr.mxu0 0.0
    %600 = vmatpush1.msra.mxu0 0.0
    %601 = vmatprep.subr.mxu0 0.0
    %602 = vmatpush1.msra.mxu0 0.0
    %603 = vmatprep.subr.mxu0 0.0
    %604 = vmatpush1.msra.mxu0 0.0
    %605 = vmatprep.subr.mxu0 0.0
    %606 = vmatpush1.msra.mxu0 0.0
    %607 = vmatprep.subr.mxu0 0.0
    %608 = vmatpush1.msra.mxu0 0.0
    %609 = vmatprep.subr.mxu0 0.0
    %610 = vmatpush1.msra.mxu0 0.0
    %611 = vmatprep.subr.mxu0 0.0
    %612 = vmatpush1.msra.mxu0 0.0
    %613 = vmatprep.mubr.f32.mxu0 0.0
    %614 = vmatmul.mubr.f32.gmra.mrb[0].mxu0 %v547
    %v615 = vpop.f32.mrb[0].mxu0
    %v616 = vadd.f32 %v76, %v615
    %v617 = vpop.f32.mrb[0].mxu0
    %618 = vdwg.mxu0
    %v619 = vadd.f32 %v543, %v616
    %v620 = vxor.u32 %v619, 2147483648
    %v621 = vmul.f32 %v620, 1.442695
    %v622 = vpow.pop %v621
    %v623 = vadd.f32 %v622, 1.0
    %v624 = vrcp.pop %v623
    %v625 = vmul.f32 1.0, %v624
    %627 = vrot.lane.b32.xlu0 %v616, 64
    %v628 = vpop.permute.xlu0 %627
    %v630 = vmul.f32 %v625, %v628
    %632 = vrot.lane.b32.xlu0 %v630, 64
    %v633 = vpop.permute.xlu0 %632
    %v635 = vadd.f32 %v543, %v633
    %v636 = vtanh.pop %v635
    %v637 = vsub.f32 %v541, %v636
    %639 = vrot.lane.b32.xlu0 %v637, 96
    %v640 = vpop.permute.xlu0 %639
    %v642 = vmul.f32 %v625, %v640
    %644 = vrot.lane.b32.xlu0 %v642, 32
    %v645 = vpop.permute.xlu0 %644
    %v647 = vadd.f32 %v636, %v645
    %vm648 = vcmp.gt.s32.totalorder %v70, 4
    %v649 = vsel %vm648, 1, 0
    %v650 = vcvt.s32.f32 %v649
    %v651 = vsub.f32 %v647, %v541
    %653 = vset.pattern.permute.xlu0 0
    %654 = vperm.xlu0 %653, %v650
    %v655 = vpop.permute.xlu0 %654
    %v657 = vmul.f32 %v655, %v651
    %v658 = vadd.f32 %v541, %v657
    %s659 = scalar_lea.vmem [#allocation2], 20
    %v660 = vld [vmem:[%s659] sm:$0xf]
    %662 = vrot.lane.b32.xlu0 %v658, 64
    %v663 = vpop.permute.xlu0 %662
    %v664 = vsel %vm78, %v663, 0
    %666 = vmatprep.subr.mxu0 0.0
    %667 = vmatpush1.msra.mxu0 %v65
    %668 = vmatprep.subr.mxu0 0.0
    %669 = vmatpush1.msra.mxu0 %v66
    %670 = vmatprep.subr.mxu0 0.0
    %671 = vmatpush1.msra.mxu0 %v67
    %672 = vmatprep.subr.mxu0 0.0
    %673 = vmatpush1.msra.mxu0 %v68
    %674 = vmatprep.subr.mxu0 0.0
    %675 = vmatpush1.msra.mxu0 0.0
    %676 = vmatprep.subr.mxu0 0.0
    %677 = vmatpush1.msra.mxu0 0.0
    %678 = vmatprep.subr.mxu0 0.0
    %679 = vmatpush1.msra.mxu0 0.0
    %680 = vmatprep.subr.mxu0 0.0
    %681 = vmatpush1.msra.mxu0 0.0
    %682 = vmatprep.subr.mxu0 0.0
    %683 = vmatpush1.msra.mxu0 0.0
    %684 = vmatprep.subr.mxu0 0.0
    %685 = vmatpush1.msra.mxu0 0.0
    %686 = vmatprep.subr.mxu0 0.0
    %687 = vmatpush1.msra.mxu0 0.0
    %688 = vmatprep.subr.mxu0 0.0
    %689 = vmatpush1.msra.mxu0 0.0
    %690 = vmatprep.subr.mxu0 0.0
    %691 = vmatpush1.msra.mxu0 0.0
    %692 = vmatprep.subr.mxu0 0.0
    %693 = vmatpush1.msra.mxu0 0.0
    %694 = vmatprep.subr.mxu0 0.0
    %695 = vmatpush1.msra.mxu0 0.0
    %696 = vmatprep.subr.mxu0 0.0
    %697 = vmatpush1.msra.mxu0 0.0
    %698 = vmatprep.subr.mxu0 0.0
    %699 = vmatpush1.msra.mxu0 0.0
    %700 = vmatprep.subr.mxu0 0.0
    %701 = vmatpush1.msra.mxu0 0.0
    %702 = vmatprep.subr.mxu0 0.0
    %703 = vmatpush1.msra.mxu0 0.0
    %704 = vmatprep.subr.mxu0 0.0
    %705 = vmatpush1.msra.mxu0 0.0
    %706 = vmatprep.subr.mxu0 0.0
    %707 = vmatpush1.msra.mxu0 0.0
    %708 = vmatprep.subr.mxu0 0.0
    %709 = vmatpush1.msra.mxu0 0.0
    %710 = vmatprep.subr.mxu0 0.0
    %711 = vmatpush1.msra.mxu0 0.0
    %712 = vmatprep.subr.mxu0 0.0
    %713 = vmatpush1.msra.mxu0 0.0
    %714 = vmatprep.subr.mxu0 0.0
    %715 = vmatpush1.msra.mxu0 0.0
    %716 = vmatprep.subr.mxu0 0.0
    %717 = vmatpush1.msra.mxu0 0.0
    %718 = vmatprep.subr.mxu0 0.0
    %719 = vmatpush1.msra.mxu0 0.0
    %720 = vmatprep.subr.mxu0 0.0
    %721 = vmatpush1.msra.mxu0 0.0
    %722 = vmatprep.subr.mxu0 0.0
    %723 = vmatpush1.msra.mxu0 0.0
    %724 = vmatprep.subr.mxu0 0.0
    %725 = vmatpush1.msra.mxu0 0.0
    %726 = vmatprep.subr.mxu0 0.0
    %727 = vmatpush1.msra.mxu0 0.0
    %728 = vmatprep.subr.mxu0 0.0
    %729 = vmatpush1.msra.mxu0 0.0
    %730 = vmatprep.mubr.f32.mxu0 0.0
    %731 = vmatmul.mubr.f32.gmra.mrb[0].mxu0 %v664
    %v732 = vpop.f32.mrb[0].mxu0
    %v733 = vadd.f32 %v76, %v732
    %v734 = vpop.f32.mrb[0].mxu0
    %735 = vdwg.mxu0
    %v736 = vadd.f32 %v660, %v733
    %v737 = vxor.u32 %v736, 2147483648
    %v738 = vmul.f32 %v737, 1.442695
    %v739 = vpow.pop %v738
    %v740 = vadd.f32 %v739, 1.0
    %v741 = vrcp.pop %v740
    %v742 = vmul.f32 1.0, %v741
    %744 = vrot.lane.b32.xlu0 %v733, 64
    %v745 = vpop.permute.xlu0 %744
    %v747 = vmul.f32 %v742, %v745
    %749 = vrot.lane.b32.xlu0 %v747, 64
    %v750 = vpop.permute.xlu0 %749
    %v752 = vadd.f32 %v660, %v750
    %v753 = vtanh.pop %v752
    %v754 = vsub.f32 %v658, %v753
    %756 = vrot.lane.b32.xlu0 %v754, 96
    %v757 = vpop.permute.xlu0 %756
    %v759 = vmul.f32 %v742, %v757
    %761 = vrot.lane.b32.xlu0 %v759, 32
    %v762 = vpop.permute.xlu0 %761
    %v764 = vadd.f32 %v753, %v762
    %vm765 = vcmp.gt.s32.totalorder %v70, 5
    %v766 = vsel %vm765, 1, 0
    %v767 = vcvt.s32.f32 %v766
    %v768 = vsub.f32 %v764, %v658
    %770 = vset.pattern.permute.xlu0 0
    %771 = vperm.xlu0 %770, %v767
    %v772 = vpop.permute.xlu0 %771
    %v774 = vmul.f32 %v772, %v768
    %v775 = vadd.f32 %v658, %v774
    %s776 = scalar_lea.vmem [#allocation2], 24
    %v777 = vld [vmem:[%s776] sm:$0xf]
    %779 = vrot.lane.b32.xlu0 %v775, 64
    %v780 = vpop.permute.xlu0 %779
    %v781 = vsel %vm78, %v780, 0
    %783 = vmatprep.subr.mxu0 0.0
    %784 = vmatpush1.msra.mxu0 %v65
    %785 = vmatprep.subr.mxu0 0.0
    %786 = vmatpush1.msra.mxu0 %v66
    %787 = vmatprep.subr.mxu0 0.0
    %788 = vmatpush1.msra.mxu0 %v67
    %789 = vmatprep.subr.mxu0 0.0
    %790 = vmatpush1.msra.mxu0 %v68
    %791 = vmatprep.subr.mxu0 0.0
    %792 = vmatpush1.msra.mxu0 0.0
    %793 = vmatprep.subr.mxu0 0.0
    %794 = vmatpush1.msra.mxu0 0.0
    %795 = vmatprep.subr.mxu0 0.0
    %796 = vmatpush1.msra.mxu0 0.0
    %797 = vmatprep.subr.mxu0 0.0
    %798 = vmatpush1.msra.mxu0 0.0
    %799 = vmatprep.subr.mxu0 0.0
    %800 = vmatpush1.msra.mxu0 0.0
    %801 = vmatprep.subr.mxu0 0.0
    %802 = vmatpush1.msra.mxu0 0.0
    %803 = vmatprep.subr.mxu0 0.0
    %804 = vmatpush1.msra.mxu0 0.0
    %805 = vmatprep.subr.mxu0 0.0
    %806 = vmatpush1.msra.mxu0 0.0
    %807 = vmatprep.subr.mxu0 0.0
    %808 = vmatpush1.msra.mxu0 0.0
    %809 = vmatprep.subr.mxu0 0.0
    %810 = vmatpush1.msra.mxu0 0.0
    %811 = vmatprep.subr.mxu0 0.0
    %812 = vmatpush1.msra.mxu0 0.0
    %813 = vmatprep.subr.mxu0 0.0
    %814 = vmatpush1.msra.mxu0 0.0
    %815 = vmatprep.subr.mxu0 0.0
    %816 = vmatpush1.msra.mxu0 0.0
    %817 = vmatprep.subr.mxu0 0.0
    %818 = vmatpush1.msra.mxu0 0.0
    %819 = vmatprep.subr.mxu0 0.0
    %820 = vmatpush1.msra.mxu0 0.0
    %821 = vmatprep.subr.mxu0 0.0
    %822 = vmatpush1.msra.mxu0 0.0
    %823 = vmatprep.subr.mxu0 0.0
    %824 = vmatpush1.msra.mxu0 0.0
    %825 = vmatprep.subr.mxu0 0.0
    %826 = vmatpush1.msra.mxu0 0.0
    %827 = vmatprep.subr.mxu0 0.0
    %828 = vmatpush1.msra.mxu0 0.0
    %829 = vmatprep.subr.mxu0 0.0
    %830 = vmatpush1.msra.mxu0 0.0
    %831 = vmatprep.subr.mxu0 0.0
    %832 = vmatpush1.msra.mxu0 0.0
    %833 = vmatprep.subr.mxu0 0.0
    %834 = vmatpush1.msra.mxu0 0.0
    %835 = vmatprep.subr.mxu0 0.0
    %836 = vmatpush1.msra.mxu0 0.0
    %837 = vmatprep.subr.mxu0 0.0
    %838 = vmatpush1.msra.mxu0 0.0
    %839 = vmatprep.subr.mxu0 0.0
    %840 = vmatpush1.msra.mxu0 0.0
    %841 = vmatprep.subr.mxu0 0.0
    %842 = vmatpush1.msra.mxu0 0.0
    %843 = vmatprep.subr.mxu0 0.0
    %844 = vmatpush1.msra.mxu0 0.0
    %845 = vmatprep.subr.mxu0 0.0
    %846 = vmatpush1.msra.mxu0 0.0
    %847 = vmatprep.mubr.f32.mxu0 0.0
    %848 = vmatmul.mubr.f32.gmra.mrb[0].mxu0 %v781
    %v849 = vpop.f32.mrb[0].mxu0
    %v850 = vadd.f32 %v76, %v849
    %v851 = vpop.f32.mrb[0].mxu0
    %852 = vdwg.mxu0
    %v853 = vadd.f32 %v777, %v850
    %v854 = vxor.u32 %v853, 2147483648
    %v855 = vmul.f32 %v854, 1.442695
    %v856 = vpow.pop %v855
    %v857 = vadd.f32 %v856, 1.0
    %v858 = vrcp.pop %v857
    %v859 = vmul.f32 1.0, %v858
    %861 = vrot.lane.b32.xlu0 %v850, 64
    %v862 = vpop.permute.xlu0 %861
    %v864 = vmul.f32 %v859, %v862
    %866 = vrot.lane.b32.xlu0 %v864, 64
    %v867 = vpop.permute.xlu0 %866
    %v869 = vadd.f32 %v777, %v867
    %v870 = vtanh.pop %v869
    %v871 = vsub.f32 %v775, %v870
    %873 = vrot.lane.b32.xlu0 %v871, 96
    %v874 = vpop.permute.xlu0 %873
    %v876 = vmul.f32 %v859, %v874
    %878 = vrot.lane.b32.xlu0 %v876, 32
    %v879 = vpop.permute.xlu0 %878
    %v881 = vadd.f32 %v870, %v879
    %vm882 = vcmp.gt.s32.totalorder %v70, 6
    %v883 = vsel %vm882, 1, 0
    %v884 = vcvt.s32.f32 %v883
    %v885 = vsub.f32 %v881, %v775
    %887 = vset.pattern.permute.xlu0 0
    %888 = vperm.xlu0 %887, %v884
    %v889 = vpop.permute.xlu0 %888
    %v891 = vmul.f32 %v889, %v885
    %v892 = vadd.f32 %v775, %v891
    %s893 = scalar_lea.vmem [#allocation2], 28
    %v894 = vld [vmem:[%s893] sm:$0xf]
    %896 = vrot.lane.b32.xlu0 %v892, 64
    %v897 = vpop.permute.xlu0 %896
    %v898 = vsel %vm78, %v897, 0
    %900 = vmatprep.subr.mxu0 0.0
    %901 = vmatpush1.msra.mxu0 %v65
    %902 = vmatprep.subr.mxu0 0.0
    %903 = vmatpush1.msra.mxu0 %v66
    %904 = vmatprep.subr.mxu0 0.0
    %905 = vmatpush1.msra.mxu0 %v67
    %906 = vmatprep.subr.mxu0 0.0
    %907 = vmatpush1.msra.mxu0 %v68
    %908 = vmatprep.subr.mxu0 0.0
    %909 = vmatpush1.msra.mxu0 0.0
    %910 = vmatprep.subr.mxu0 0.0
    %911 = vmatpush1.msra.mxu0 0.0
    %912 = vmatprep.subr.mxu0 0.0
    %913 = vmatpush1.msra.mxu0 0.0
    %914 = vmatprep.subr.mxu0 0.0
    %915 = vmatpush1.msra.mxu0 0.0
    %916 = vmatprep.subr.mxu0 0.0
    %917 = vmatpush1.msra.mxu0 0.0
    %918 = vmatprep.subr.mxu0 0.0
    %919 = vmatpush1.msra.mxu0 0.0
    %920 = vmatprep.subr.mxu0 0.0
    %921 = vmatpush1.msra.mxu0 0.0
    %922 = vmatprep.subr.mxu0 0.0
    %923 = vmatpush1.msra.mxu0 0.0
    %924 = vmatprep.subr.mxu0 0.0
    %925 = vmatpush1.msra.mxu0 0.0
    %926 = vmatprep.subr.mxu0 0.0
    %927 = vmatpush1.msra.mxu0 0.0
    %928 = vmatprep.subr.mxu0 0.0
    %929 = vmatpush1.msra.mxu0 0.0
    %930 = vmatprep.subr.mxu0 0.0
    %931 = vmatpush1.msra.mxu0 0.0
    %932 = vmatprep.subr.mxu0 0.0
    %933 = vmatpush1.msra.mxu0 0.0
    %934 = vmatprep.subr.mxu0 0.0
    %935 = vmatpush1.msra.mxu0 0.0
    %936 = vmatprep.subr.mxu0 0.0
    %937 = vmatpush1.msra.mxu0 0.0
    %938 = vmatprep.subr.mxu0 0.0
    %939 = vmatpush1.msra.mxu0 0.0
    %940 = vmatprep.subr.mxu0 0.0
    %941 = vmatpush1.msra.mxu0 0.0
    %942 = vmatprep.subr.mxu0 0.0
    %943 = vmatpush1.msra.mxu0 0.0
    %944 = vmatprep.subr.mxu0 0.0
    %945 = vmatpush1.msra.mxu0 0.0
    %946 = vmatprep.subr.mxu0 0.0
    %947 = vmatpush1.msra.mxu0 0.0
    %948 = vmatprep.subr.mxu0 0.0
    %949 = vmatpush1.msra.mxu0 0.0
    %950 = vmatprep.subr.mxu0 0.0
    %951 = vmatpush1.msra.mxu0 0.0
    %952 = vmatprep.subr.mxu0 0.0
    %953 = vmatpush1.msra.mxu0 0.0
    %954 = vmatprep.subr.mxu0 0.0
    %955 = vmatpush1.msra.mxu0 0.0
    %956 = vmatprep.subr.mxu0 0.0
    %957 = vmatpush1.msra.mxu0 0.0
    %958 = vmatprep.subr.mxu0 0.0
    %959 = vmatpush1.msra.mxu0 0.0
    %960 = vmatprep.subr.mxu0 0.0
    %961 = vmatpush1.msra.mxu0 0.0
    %962 = vmatprep.subr.mxu0 0.0
    %963 = vmatpush1.msra.mxu0 0.0
    %964 = vmatprep.mubr.f32.mxu0 0.0
    %965 = vmatmul.mubr.f32.gmra.mrb[0].mxu0 %v898
    %v966 = vpop.f32.mrb[0].mxu0
    %v967 = vadd.f32 %v76, %v966
    %v968 = vpop.f32.mrb[0].mxu0
    %969 = vdwg.mxu0
    %v970 = vadd.f32 %v894, %v967
    %v971 = vxor.u32 %v970, 2147483648
    %v972 = vmul.f32 %v971, 1.442695
    %v973 = vpow.pop %v972
    %v974 = vadd.f32 %v973, 1.0
    %v975 = vrcp.pop %v974
    %v976 = vmul.f32 1.0, %v975
    %978 = vrot.lane.b32.xlu0 %v967, 64
    %v979 = vpop.permute.xlu0 %978
    %v981 = vmul.f32 %v976, %v979
    %983 = vrot.lane.b32.xlu0 %v981, 64
    %v984 = vpop.permute.xlu0 %983
    %v986 = vadd.f32 %v894, %v984
    %v987 = vtanh.pop %v986
    %v988 = vsub.f32 %v892, %v987
    %990 = vrot.lane.b32.xlu0 %v988, 96
    %v991 = vpop.permute.xlu0 %990
    %v993 = vmul.f32 %v976, %v991
    %995 = vrot.lane.b32.xlu0 %v993, 32
    %v996 = vpop.permute.xlu0 %995
    %v998 = vadd.f32 %v987, %v996
    %vm999 = vcmp.gt.s32.totalorder %v70, 7
    %v1000 = vsel %vm999, 1, 0
    %v1001 = vcvt.s32.f32 %v1000
    %v1002 = vsub.f32 %v998, %v892
    %1004 = vset.pattern.permute.xlu0 0
    %1005 = vperm.xlu0 %1004, %v1001
    %v1006 = vpop.permute.xlu0 %1005
    %v1008 = vmul.f32 %v1006, %v1002
    %v1009 = vadd.f32 %v892, %v1008
    %v1010 = vld [vmem:[#allocation7] sm:$0xff]
    %v1011 = vld [vmem:[#allocation7 + $0x8] sm:$0xff]
    %v1012 = vld [vmem:[#allocation7 + $0x10] sm:$0xff]
    %v1013 = vld [vmem:[#allocation7 + $0x18] sm:$0xff]
    %v1014 = vld [vmem:[%s5] sm:$0x1]
    %v1016 = vlaneseq
    %v1017 = vshrl.u32 %v1016, 7
    %v1018 = vsub.s32 0, %v1017
    %v1019 = vrot.slane %v1014, %v1018
    %1022 = vrot.lane.b32.xlu0 %v1009, 64
    %v1023 = vpop.permute.xlu0 %1022
    %v1024 = vsel %vm78, %v1023, 0
    %1026 = vmatprep.subr.mxu0 0.0
    %1027 = vmatpush1.msra.mxu0 %v1010
    %1028 = vmatprep.subr.mxu0 0.0
    %1029 = vmatpush1.msra.mxu0 %v1011
    %1030 = vmatprep.subr.mxu0 0.0
    %1031 = vmatpush1.msra.mxu0 %v1012
    %1032 = vmatprep.subr.mxu0 0.0
    %1033 = vmatpush1.msra.mxu0 %v1013
    %1034 = vmatprep.subr.mxu0 0.0
    %1035 = vmatpush1.msra.mxu0 0.0
    %1036 = vmatprep.subr.mxu0 0.0
    %1037 = vmatpush1.msra.mxu0 0.0
    %1038 = vmatprep.subr.mxu0 0.0
    %1039 = vmatpush1.msra.mxu0 0.0
    %1040 = vmatprep.subr.mxu0 0.0
    %1041 = vmatpush1.msra.mxu0 0.0
    %1042 = vmatprep.subr.mxu0 0.0
    %1043 = vmatpush1.msra.mxu0 0.0
    %1044 = vmatprep.subr.mxu0 0.0
    %1045 = vmatpush1.msra.mxu0 0.0
    %1046 = vmatprep.subr.mxu0 0.0
    %1047 = vmatpush1.msra.mxu0 0.0
    %1048 = vmatprep.subr.mxu0 0.0
    %1049 = vmatpush1.msra.mxu0 0.0
    %1050 = vmatprep.subr.mxu0 0.0
    %1051 = vmatpush1.msra.mxu0 0.0
    %1052 = vmatprep.subr.mxu0 0.0
    %1053 = vmatpush1.msra.mxu0 0.0
    %1054 = vmatprep.subr.mxu0 0.0
    %1055 = vmatpush1.msra.mxu0 0.0
    %1056 = vmatprep.subr.mxu0 0.0
    %1057 = vmatpush1.msra.mxu0 0.0
    %1058 = vmatprep.subr.mxu0 0.0
    %1059 = vmatpush1.msra.mxu0 0.0
    %1060 = vmatprep.subr.mxu0 0.0
    %1061 = vmatpush1.msra.mxu0 0.0
    %1062 = vmatprep.subr.mxu0 0.0
    %1063 = vmatpush1.msra.mxu0 0.0
    %1064 = vmatprep.subr.mxu0 0.0
    %1065 = vmatpush1.msra.mxu0 0.0
    %1066 = vmatprep.subr.mxu0 0.0
    %1067 = vmatpush1.msra.mxu0 0.0
    %1068 = vmatprep.subr.mxu0 0.0
    %1069 = vmatpush1.msra.mxu0 0.0
    %1070 = vmatprep.subr.mxu0 0.0
    %1071 = vmatpush1.msra.mxu0 0.0
    %1072 = vmatprep.subr.mxu0 0.0
    %1073 = vmatpush1.msra.mxu0 0.0
    %1074 = vmatprep.subr.mxu0 0.0
    %1075 = vmatpush1.msra.mxu0 0.0
    %1076 = vmatprep.subr.mxu0 0.0
    %1077 = vmatpush1.msra.mxu0 0.0
    %1078 = vmatprep.subr.mxu0 0.0
    %1079 = vmatpush1.msra.mxu0 0.0
    %1080 = vmatprep.subr.mxu0 0.0
    %1081 = vmatpush1.msra.mxu0 0.0
    %1082 = vmatprep.subr.mxu0 0.0
    %1083 = vmatpush1.msra.mxu0 0.0
    %1084 = vmatprep.subr.mxu0 0.0
    %1085 = vmatpush1.msra.mxu0 0.0
    %1086 = vmatprep.subr.mxu0 0.0
    %1087 = vmatpush1.msra.mxu0 0.0
    %1088 = vmatprep.subr.mxu0 0.0
    %1089 = vmatpush1.msra.mxu0 0.0
    %1090 = vmatprep.mubr.f32.mxu0 0.0
    %1091 = vmatmul.mubr.f32.gmra.mrb[0].mxu0 %v1024
    %v1092 = vpop.f32.mrb[0].mxu0
    %v1093 = vadd.f32 %v1019, %v1092
    %v1094 = vpop.f32.mrb[0].mxu0
    %1095 = vdwg.mxu0
    %v1096 = vmul.f32 %v1093, %v1093
    %vm1097 = vcmask 257024
    %v1098 = vsel %vm1097, %v1096, 0.0
    %1099 = vadd.xlane.f32.xlu0 %v1098
    %v1100 = vpop.xlane.xlu0 %1099
    %v1101 = vrsqrt.pop %v1100
    %v1102 = vmul.f32 %v1100, %v1101
    %vm1103 = vcmp.eq.f32.partialorder %v1100, inf
    %v1104 = vsel %vm1103, %v1100, %v1102
    %vm1105 = vcmp.eq.f32.partialorder %v1100, 0.0
    %v1106 = vand.u32 %v1100, 2147483648
    %v1107 = vsel %vm1105, %v1106, %v1104
    %v1108 = vadd.f32 %v1107, 1e-09
    %v1109 = vrcp.pop %v1108
    %v1110 = vmul.f32 %v1093, %v1109
    %1111 = vst.msk [vmem:[#allocation8] sm:$0xf] %vm1097, %v1110
    // Predicated region
    $region38: #{tpu_custom_call.1} parent=1 // pred_check
      _
    $region39: #{tpu_custom_call.1} parent=1 // pred_check_branch
      %1113 = sbr.rel (0) target = $region41
    $region40: #{tpu_custom_call.1} parent=1 // pred_region
      %s1115 = ssub.s32 64, 64
      %1116 = vsyncadd [#allocation4], %s1115
      %s1118 = sshll.u32 [#allocation8], 4
      %s1119 = int_to_ptr.vmem [resolvable:$true] %s1118
      %1121 = dma.vmem_to_hbm [thread:$0]  %s1119, 64, %s6, [#allocation4]
    $region41: #{tpu_custom_call.1} parent=1 // pred_fallthru
      _
    // Predicated region
    $region42: #{tpu_custom_call.1} parent=1 // pred_check
      _
    $region43: #{tpu_custom_call.1} parent=1 // pred_check_branch
      %1123 = sbr.rel (0) target = $region45
    $region44: #{tpu_custom_call.1} parent=1 // pred_region
      %1124 = dma.done [#allocation4], 64
    $region45: #{tpu_custom_call.1} parent=1 // pred_fallthru
      _
    %1125 = vsyncpa [#allocation3], 1
    %1126 = vsyncpa [#allocation6], 1
    %1127 = vsyncpa [#allocation4], 1

</llo_original>
